<compile_context>
chip_gen: v5e
topology: v5e:2x2
jax: 0.10.0
libtpu: 0.0.40
codegen_flags: <defaults>
</compile_context>

<pallas_src>
import functools

import jax
import jax.numpy as jnp
from jax.experimental import pallas as pl
from jax.experimental.pallas import tpu as pltpu


# -----------------------------------------------------------------------------
# Fused bidirectional LSTM layer: one kernel invocation, in-kernel time scan.
# -----------------------------------------------------------------------------
def _bilstm_kernel(x_ref, wih_ref, b_ref, whh_ref, lens_ref,
                   y_ref, hN_ref, cN_ref,
                   gx_scr, gq_scr):
    T, B, H2 = y_ref.shape
    H = H2 // 2
    G = 4 * H                 # gate width per direction
    B2 = 2 * B                # fwd rows [0:B), bwd rows [B:2B)

    # ---- prologue: input projection for both directions, one MXU op --------
    # gx = [ x @ W_ih_f^T + b_f  |  x @ W_ih_b^T + b_b ]        (T*B, 8H)
    gx_scr[...] = (jnp.dot(x_ref[...], wih_ref[...],
                           preferred_element_type=jnp.float32)
                   + b_ref[...])

    # Re-arrange into per-step blocks so the recurrent loop does one aligned
    # (2B, 4H) load per step: block s = [fwd gates at time s ; bwd gates at
    # time T-1-s].  Static slices, off the recurrent critical path.
    for t in range(T):
        gq_scr[t * B2:t * B2 + B, :] = gx_scr[t * B:(t + 1) * B, 0:G]
        gq_scr[t * B2 + B:(t + 1) * B2, :] = \
            gx_scr[(T - 1 - t) * B:(T - t) * B, G:2 * G]

    # ---- loop-invariant values (hoisted) ------------------------------------
    whh = whh_ref[...]                                          # (H, 8H)
    lens = lens_ref[...]                                        # (2B, 1) int32
    row = jax.lax.broadcasted_iota(jnp.int32, (B2, 1), 0)
    is_fwd = row < B                                            # (2B, 1) bool

    # ---- time recurrence -----------------------------------------------------
    def step(s, carry):
        h, c = carry                                            # (2B, H) each
        rb = T - 1 - s                                          # backward time

        off = pl.multiple_of(s * B2, B2)
        gx = gq_scr[pl.ds(off, B2), :]                          # (2B, 4H)

        # one recurrent matmul for both directions, then pick each (8,128) half
        hh = jnp.dot(h, whh, preferred_element_type=jnp.float32)   # (2B, 8H)
        gates = gx + jnp.where(is_fwd, hh[:, :G], hh[:, G:])       # (2B, 4H)

        # One full-vreg sigmoid (i|f|·|o lanes), one tanh for g, one for c_new.
        sg = jax.nn.sigmoid(gates)                              # (2B, 4H)
        i = sg[:, 0:H]
        f = sg[:, H:2 * H]
        o = sg[:, 3 * H:4 * H]
        g = jnp.tanh(gates[:, 2 * H:3 * H])

        c_new = f * c + i * g
        h_new = o * jnp.tanh(c_new)

        # packed-sequence validity: fwd rows use time s, bwd rows time T-1-s
        t_idx = jnp.where(is_fwd, s, rb)                        # (2B, 1)
        m = t_idx < lens                                        # (2B, 1) bool

        h = jnp.where(m, h_new, h)                              # freeze padded
        c = jnp.where(m, c_new, c)

        # pad_packed_sequence: padded positions emit zeros in the output
        y_ref[s, :, pl.ds(0, H)] = jnp.where(m[:B], h_new[:B], 0.0)
        y_ref[rb, :, pl.ds(H, H)] = jnp.where(m[B:], h_new[B:], 0.0)
        return h, c

    z = jnp.zeros((B2, H), jnp.float32)
    hF, cF = jax.lax.fori_loop(0, T, step, (z, z), unroll=True)

    hN_ref[...] = hF                                            # (2B, H)
    cN_ref[...] = cF


def bilstm_layer(x_flat, wih_cat, b_cat, whh_cat, lens2, T, B, H):
    """x_flat: (T*B, E). Returns y (T, B, 2H), h_n (2B, H), c_n (2B, H)."""
    E = x_flat.shape[1]
    G8 = 8 * H
    y, hN, cN = pl.pallas_call(
        _bilstm_kernel,
        out_shape=(jax.ShapeDtypeStruct((T, B, 2 * H), jnp.float32),
                   jax.ShapeDtypeStruct((2 * B, H), jnp.float32),
                   jax.ShapeDtypeStruct((2 * B, H), jnp.float32)),
        grid_spec=pltpu.PrefetchScalarGridSpec(
            num_scalar_prefetch=0,
            grid=(1,),
            in_specs=[
                pl.BlockSpec((T * B, E), lambda i: (0, 0)),     # x (flat)
                pl.BlockSpec((E, G8), lambda i: (0, 0)),        # [Wih_f^T|Wih_b^T]
                pl.BlockSpec((1, G8), lambda i: (0, 0)),        # fused biases
                pl.BlockSpec((H, G8), lambda i: (0, 0)),        # [Whh_f^T|Whh_b^T]
                pl.BlockSpec((2 * B, 1), lambda i: (0, 0)),     # lengths (x2)
            ],
            out_specs=[
                pl.BlockSpec((T, B, 2 * H), lambda i: (0, 0, 0)),
                pl.BlockSpec((2 * B, H), lambda i: (0, 0)),
                pl.BlockSpec((2 * B, H), lambda i: (0, 0)),
            ],
            scratch_shapes=[
                pltpu.VMEM((T * B, G8), jnp.float32),           # gx (prologue)
                pltpu.VMEM((T * 2 * B, 4 * H), jnp.float32),    # per-step gates_x
            ]),
        compiler_params=pltpu.CompilerParams(
            dimension_semantics=("arbitrary",)),
    )(x_flat, wih_cat, b_cat, whh_cat, lens2)
    return y, hN, cN


# -----------------------------------------------------------------------------
# Encoder.forward equivalent
# -----------------------------------------------------------------------------
def encoder_forward(fused_params, embedded, input_lengths, restore_indexes,
                    hidden_size, num_layers, bidirectional=True):
    """embedded: (T, B, E) float32, sorted by descending input_lengths.
    Returns (output (T, B, H), (h_n, c_n)) matching the PyTorch module."""
    assert bidirectional, "module's forward sums fwd+bwd halves"
    T, B, _ = embedded.shape
    H = hidden_size

    lens2 = jnp.concatenate([input_lengths, input_lengths]).reshape(
        2 * B, 1).astype(jnp.int32)

    x = embedded
    h_list, c_list = [], []
    for layer in range(num_layers):
        wih_cat, b_cat, whh_cat = fused_params[layer]
        x_flat = x.reshape(T * B, x.shape[-1])
        y, hN, cN = bilstm_layer(x_flat, wih_cat, b_cat, whh_cat, lens2, T, B, H)
        # TODO(synk): inter-layer dropout (num_layers > 1, training) omitted.
        h_list.append(hN.reshape(2, B, H))
        c_list.append(cN.reshape(2, B, H))
        x = y                                   # (T, B, 2H) feeds next layer

    h_n = jnp.concatenate(h_list, axis=0)       # (num_layers*2, B, H)
    c_n = jnp.concatenate(c_list, axis=0)

    # output.index_select(1, restore_indexes); hidden is NOT reordered
    output = x[:, restore_indexes, :]
    # sum forward + backward halves
    output = output[:, :, :H] + output[:, :, H:]
    return output, (h_n, c_n)


# -----------------------------------------------------------------------------
# Parameters: PyTorch LSTM shapes (W_ih (4H, in), W_hh (4H, H), b_ih, b_hh per
# layer per direction), uniform(-1/sqrt(H), 1/sqrt(H)).  Kernel consumes a
# fused, pre-transposed layout built once in the wrapper.
# -----------------------------------------------------------------------------
def init_raw_params(key, embedding_size, hidden_size, num_layers):
    H = hidden_size
    k = 1.0 / (H ** 0.5)
    raw = {}
    for layer in range(num_layers):
        in_size = embedding_size if layer == 0 else 2 * H
        for d in range(2):
            key, k1, k2, k3, k4 = jax.random.split(key, 5)
            w_ih = jax.random.uniform(k1, (4 * H, in_size), jnp.float32, -k, k)
            w_hh = jax.random.uniform(k2, (4 * H, H), jnp.float32, -k, k)
            b_ih = jax.random.uniform(k3, (4 * H,), jnp.float32, -k, k)
            b_hh = jax.random.uniform(k4, (4 * H,), jnp.float32, -k, k)
            raw[(layer, d)] = (w_ih, w_hh, b_ih, b_hh)
    return raw


def fuse_params(raw, hidden_size, num_layers):
    H = hidden_size
    fused = {}
    for layer in range(num_layers):
        wih_t, whh_t, bs = [], [], []
        for d in range(2):
            w_ih, w_hh, b_ih, b_hh = raw[(layer, d)]
            wih_t.append(w_ih.T)                # (in, 4H)
            whh_t.append(w_hh.T)                # (H, 4H)
            bs.append(b_ih + b_hh)              # (4H,)
        fused[layer] = (jnp.concatenate(wih_t, axis=1),            # (in, 8H)
                        jnp.concatenate(bs, axis=0).reshape(1, 8 * H),
                        jnp.concatenate(whh_t, axis=1))            # (H, 8H)
    return fused


# -----------------------------------------------------------------------------
# Pure-JAX reference (mirrors PyTorch packed bidirectional LSTM, zero init).
# -----------------------------------------------------------------------------
def encoder_reference(raw, embedded, input_lengths, restore_indexes,
                      hidden_size, num_layers):
    T, B, _ = embedded.shape
    H = hidden_size
    x = embedded
    h_list, c_list = [], []
    for layer in range(num_layers):
        outs = []
        for d in range(2):
            w_ih, w_hh, b_ih, b_hh = raw[(layer, d)]
            h = jnp.zeros((B, H), jnp.float32)
            c = jnp.zeros((B, H), jnp.float32)
            ys = [None] * T
            order = range(T) if d == 0 else range(T - 1, -1, -1)
            for t in order:
                gates = x[t] @ w_ih.T + h @ w_hh.T + b_ih + b_hh
                i = jax.nn.sigmoid(gates[:, :H])
                f = jax.nn.sigmoid(gates[:, H:2 * H])
                g = jnp.tanh(gates[:, 2 * H:3 * H])
                o = jax.nn.sigmoid(gates[:, 3 * H:])
                c_new = f * c + i * g
                h_new = o * jnp.tanh(c_new)
                m = (t < input_lengths)[:, None].astype(jnp.float32)
                ys[t] = m * h_new
                h = m * h_new + (1.0 - m) * h
                c = m * c_new + (1.0 - m) * c
            outs.append(jnp.stack(ys, axis=0))
            h_list.append(h)
            c_list.append(c)
        x = jnp.concatenate(outs, axis=-1)
    h_n = jnp.stack(h_list, axis=0)
    c_n = jnp.stack(c_list, axis=0)
    out = x[:, restore_indexes, :]
    out = out[:, :, :H] + out[:, :, H:]
    return out, (h_n, c_n)


if __name__ == "__main__":
    # config
    hidden_size = 32
    num_layers = 1
    num_emb = True
    bidirectional = True
    embedding_size = 30 + (2 if num_emb else 0)   # == 32

    T, B = 8, 4
    key = jax.random.PRNGKey(0)
    key, kx = jax.random.split(key)

    # inputs: padded embeddings sorted by descending length (pack requirement)
    embedded = jax.random.normal(kx, (T, B, embedding_size), jnp.float32)
    input_lengths = jnp.array([8, 6, 5, 3], dtype=jnp.int32)      # descending
    restore_indexes = jnp.array([2, 0, 3, 1], dtype=jnp.int32)    # batch perm

    # zero out padded positions of the input (as a padded batch would be)
    valid = (jnp.arange(T)[:, None] < input_lengths[None, :]).astype(jnp.float32)
    embedded = embedded * valid[..., None]

    raw_params = init_raw_params(key, embedding_size, hidden_size, num_layers)
    fused_params = fuse_params(raw_params, hidden_size, num_layers)

    fwd = functools.partial(encoder_forward,
                            hidden_size=hidden_size,
                            num_layers=num_layers,
                            bidirectional=bidirectional)
    output, (h_n, c_n) = fwd(fused_params, embedded, input_lengths,
                             restore_indexes)
    output = jax.block_until_ready(output)
    h_n = jax.block_until_ready(h_n)
    c_n = jax.block_until_ready(c_n)

    assert output.shape == (T, B, hidden_size)
    assert h_n.shape == (num_layers * 2, B, hidden_size)
    assert c_n.shape == (num_layers * 2, B, hidden_size)

    # correctness check against a pure-JAX reference (loose f32/MXU tolerance)
    ref_out, (ref_h, ref_c) = encoder_reference(
        raw_params, embedded, input_lengths, restore_indexes,
        hidden_size, num_layers)
    assert float(jnp.max(jnp.abs(output - ref_out))) < 5e-2
    assert float(jnp.max(jnp.abs(h_n - ref_h))) < 5e-2
    assert float(jnp.max(jnp.abs(c_n - ref_c))) < 5e-2

    print("KERNEL_OK")
</pallas_src>

<mosaic_0001>
module attributes {stable_mosaic.version = 11 : i64} {
  func.func @_bilstm_kernel(%arg0: i32, %arg1: memref<32x32xf32, #tpu.memory_space<vmem>>, %arg2: memref<32x256xf32, #tpu.memory_space<vmem>>, %arg3: memref<1x256xf32, #tpu.memory_space<vmem>>, %arg4: memref<32x256xf32, #tpu.memory_space<vmem>>, %arg5: memref<8x1xi32, #tpu.memory_space<vmem>>, %arg6: memref<8x4x64xf32, #tpu.memory_space<vmem>>, %arg7: memref<8x32xf32, #tpu.memory_space<vmem>>, %arg8: memref<8x32xf32, #tpu.memory_space<vmem>>, %arg9: memref<32x256xf32, #tpu.memory_space<vmem>>, %arg10: memref<64x128xf32, #tpu.memory_space<vmem>>) attributes {dimension_semantics = [#tpu.dimension_semantics<arbitrary>], iteration_bounds = array<i64: 1>, scalar_prefetch = 0 : i64, scratch_operands = 2 : i64, tpu.core_type = #tpu.core_type<tc>, window_params = [{pipeline_mode = #tpu.pipeline_mode<synchronous>, transform_indices = @transform_0, window_bounds = array<i64: 32, 32>}, {pipeline_mode = #tpu.pipeline_mode<synchronous>, transform_indices = @transform_1, window_bounds = array<i64: 32, 256>}, {pipeline_mode = #tpu.pipeline_mode<synchronous>, transform_indices = @transform_2, window_bounds = array<i64: 1, 256>}, {pipeline_mode = #tpu.pipeline_mode<synchronous>, transform_indices = @transform_3, window_bounds = array<i64: 32, 256>}, {pipeline_mode = #tpu.pipeline_mode<synchronous>, transform_indices = @transform_4, window_bounds = array<i64: 8, 1>}, {pipeline_mode = #tpu.pipeline_mode<synchronous>, transform_indices = @transform_5, window_bounds = array<i64: 8, 4, 64>}, {pipeline_mode = #tpu.pipeline_mode<synchronous>, transform_indices = @transform_6, window_bounds = array<i64: 8, 32>}, {pipeline_mode = #tpu.pipeline_mode<synchronous>, transform_indices = @transform_7, window_bounds = array<i64: 8, 32>}]} {
    %c0 = arith.constant 0 : index
    %c0_0 = arith.constant 0 : index
    %0 = vector.load %arg1[%c0, %c0_0] : memref<32x32xf32, #tpu.memory_space<vmem>>, vector<32x32xf32>
    %c0_1 = arith.constant 0 : index
    %c0_2 = arith.constant 0 : index
    %1 = vector.load %arg2[%c0_1, %c0_2] : memref<32x256xf32, #tpu.memory_space<vmem>>, vector<32x256xf32>
    %cst = arith.constant dense<0.000000e+00> : vector<32x256xf32>
    %2 = tpu.matmul %0, %1, %cst {dimension_numbers = #tpu.dot_dimension_numbers<[1], [0], [0], [1], [0, 0, 1, 1], [], []>} : vector<32x32xf32>, vector<32x256xf32>, vector<32x256xf32> -> vector<32x256xf32>
    %c0_3 = arith.constant 0 : index
    %c0_4 = arith.constant 0 : index
    %3 = vector.load %arg3[%c0_3, %c0_4] : memref<1x256xf32, #tpu.memory_space<vmem>>, vector<1x256xf32>
    %4 = vector.broadcast %3 : vector<1x256xf32> to vector<32x256xf32>
    %5 = arith.addf %2, %4 : vector<32x256xf32>
    %c0_5 = arith.constant 0 : index
    %c0_6 = arith.constant 0 : index
    %6 = vector.load %arg9[%c0_5, %c0_6] : memref<32x256xf32, #tpu.memory_space<vmem>>, vector<32x256xf32>
    tpu.vector_store %arg9[%c0_5, %c0_6], %5 {strides = array<i32>} : memref<32x256xf32, #tpu.memory_space<vmem>>, vector<32x256xf32>,
    %c0_7 = arith.constant 0 : index
    %c0_8 = arith.constant 0 : index
    %7 = vector.load %arg9[%c0_7, %c0_8] : memref<32x256xf32, #tpu.memory_space<vmem>>, vector<4x128xf32>
    %c0_9 = arith.constant 0 : index
    %c0_10 = arith.constant 0 : index
    %8 = vector.load %arg10[%c0_9, %c0_10] : memref<64x128xf32, #tpu.memory_space<vmem>>, vector<4x128xf32>
    tpu.vector_store %arg10[%c0_9, %c0_10], %7 {strides = array<i32>} : memref<64x128xf32, #tpu.memory_space<vmem>>, vector<4x128xf32>,
    %c28 = arith.constant 28 : index
    %c128 = arith.constant 128 : index
    %9 = vector.load %arg9[%c28, %c128] : memref<32x256xf32, #tpu.memory_space<vmem>>, vector<4x128xf32>
    %c4 = arith.constant 4 : index
    %c0_11 = arith.constant 0 : index
    %10 = vector.load %arg10[%c4, %c0_11] : memref<64x128xf32, #tpu.memory_space<vmem>>, vector<4x128xf32>
    tpu.vector_store %arg10[%c4, %c0_11], %9 {strides = array<i32>} : memref<64x128xf32, #tpu.memory_space<vmem>>, vector<4x128xf32>,
    %c4_12 = arith.constant 4 : index
    %c0_13 = arith.constant 0 : index
    %11 = vector.load %arg9[%c4_12, %c0_13] : memref<32x256xf32, #tpu.memory_space<vmem>>, vector<4x128xf32>
    %c8 = arith.constant 8 : index
    %c0_14 = arith.constant 0 : index
    %12 = vector.load %arg10[%c8, %c0_14] : memref<64x128xf32, #tpu.memory_space<vmem>>, vector<4x128xf32>
    tpu.vector_store %arg10[%c8, %c0_14], %11 {strides = array<i32>} : memref<64x128xf32, #tpu.memory_space<vmem>>, vector<4x128xf32>,
    %c24 = arith.constant 24 : index
    %c128_15 = arith.constant 128 : index
    %13 = vector.load %arg9[%c24, %c128_15] : memref<32x256xf32, #tpu.memory_space<vmem>>, vector<4x128xf32>
    %c12 = arith.constant 12 : index
    %c0_16 = arith.constant 0 : index
    %14 = vector.load %arg10[%c12, %c0_16] : memref<64x128xf32, #tpu.memory_space<vmem>>, vector<4x128xf32>
    tpu.vector_store %arg10[%c12, %c0_16], %13 {strides = array<i32>} : memref<64x128xf32, #tpu.memory_space<vmem>>, vector<4x128xf32>,
    %c8_17 = arith.constant 8 : index
    %c0_18 = arith.constant 0 : index
    %15 = vector.load %arg9[%c8_17, %c0_18] : memref<32x256xf32, #tpu.memory_space<vmem>>, vector<4x128xf32>
    %c16 = arith.constant 16 : index
    %c0_19 = arith.constant 0 : index
    %16 = vector.load %arg10[%c16, %c0_19] : memref<64x128xf32, #tpu.memory_space<vmem>>, vector<4x128xf32>
    tpu.vector_store %arg10[%c16, %c0_19], %15 {strides = array<i32>} : memref<64x128xf32, #tpu.memory_space<vmem>>, vector<4x128xf32>,
    %c20 = arith.constant 20 : index
    %c128_20 = arith.constant 128 : index
    %17 = vector.load %arg9[%c20, %c128_20] : memref<32x256xf32, #tpu.memory_space<vmem>>, vector<4x128xf32>
    %c20_21 = arith.constant 20 : index
    %c0_22 = arith.constant 0 : index
    %18 = vector.load %arg10[%c20_21, %c0_22] : memref<64x128xf32, #tpu.memory_space<vmem>>, vector<4x128xf32>
    tpu.vector_store %arg10[%c20_21, %c0_22], %17 {strides = array<i32>} : memref<64x128xf32, #tpu.memory_space<vmem>>, vector<4x128xf32>,
    %c12_23 = arith.constant 12 : index
    %c0_24 = arith.constant 0 : index
    %19 = vector.load %arg9[%c12_23, %c0_24] : memref<32x256xf32, #tpu.memory_space<vmem>>, vector<4x128xf32>
    %c24_25 = arith.constant 24 : index
    %c0_26 = arith.constant 0 : index
    %20 = vector.load %arg10[%c24_25, %c0_26] : memref<64x128xf32, #tpu.memory_space<vmem>>, vector<4x128xf32>
    tpu.vector_store %arg10[%c24_25, %c0_26], %19 {strides = array<i32>} : memref<64x128xf32, #tpu.memory_space<vmem>>, vector<4x128xf32>,
    %c16_27 = arith.constant 16 : index
    %c128_28 = arith.constant 128 : index
    %21 = vector.load %arg9[%c16_27, %c128_28] : memref<32x256xf32, #tpu.memory_space<vmem>>, vector<4x128xf32>
    %c28_29 = arith.constant 28 : index
    %c0_30 = arith.constant 0 : index
    %22 = vector.load %arg10[%c28_29, %c0_30] : memref<64x128xf32, #tpu.memory_space<vmem>>, vector<4x128xf32>
    tpu.vector_store %arg10[%c28_29, %c0_30], %21 {strides = array<i32>} : memref<64x128xf32, #tpu.memory_space<vmem>>, vector<4x128xf32>,
    %c16_31 = arith.constant 16 : index
    %c0_32 = arith.constant 0 : index
    %23 = vector.load %arg9[%c16_31, %c0_32] : memref<32x256xf32, #tpu.memory_space<vmem>>, vector<4x128xf32>
    %c32 = arith.constant 32 : index
    %c0_33 = arith.constant 0 : index
    %24 = vector.load %arg10[%c32, %c0_33] : memref<64x128xf32, #tpu.memory_space<vmem>>, vector<4x128xf32>
    tpu.vector_store %arg10[%c32, %c0_33], %23 {strides = array<i32>} : memref<64x128xf32, #tpu.memory_space<vmem>>, vector<4x128xf32>,
    %c12_34 = arith.constant 12 : index
    %c128_35 = arith.constant 128 : index
    %25 = vector.load %arg9[%c12_34, %c128_35] : memref<32x256xf32, #tpu.memory_space<vmem>>, vector<4x128xf32>
    %c36 = arith.constant 36 : index
    %c0_36 = arith.constant 0 : index
    %26 = vector.load %arg10[%c36, %c0_36] : memref<64x128xf32, #tpu.memory_space<vmem>>, vector<4x128xf32>
    tpu.vector_store %arg10[%c36, %c0_36], %25 {strides = array<i32>} : memref<64x128xf32, #tpu.memory_space<vmem>>, vector<4x128xf32>,
    %c20_37 = arith.constant 20 : index
    %c0_38 = arith.constant 0 : index
    %27 = vector.load %arg9[%c20_37, %c0_38] : memref<32x256xf32, #tpu.memory_space<vmem>>, vector<4x128xf32>
    %c40 = arith.constant 40 : index
    %c0_39 = arith.constant 0 : index
    %28 = vector.load %arg10[%c40, %c0_39] : memref<64x128xf32, #tpu.memory_space<vmem>>, vector<4x128xf32>
    tpu.vector_store %arg10[%c40, %c0_39], %27 {strides = array<i32>} : memref<64x128xf32, #tpu.memory_space<vmem>>, vector<4x128xf32>,
    %c8_40 = arith.constant 8 : index
    %c128_41 = arith.constant 128 : index
    %29 = vector.load %arg9[%c8_40, %c128_41] : memref<32x256xf32, #tpu.memory_space<vmem>>, vector<4x128xf32>
    %c44 = arith.constant 44 : index
    %c0_42 = arith.constant 0 : index
    %30 = vector.load %arg10[%c44, %c0_42] : memref<64x128xf32, #tpu.memory_space<vmem>>, vector<4x128xf32>
    tpu.vector_store %arg10[%c44, %c0_42], %29 {strides = array<i32>} : memref<64x128xf32, #tpu.memory_space<vmem>>, vector<4x128xf32>,
    %c24_43 = arith.constant 24 : index
    %c0_44 = arith.constant 0 : index
    %31 = vector.load %arg9[%c24_43, %c0_44] : memref<32x256xf32, #tpu.memory_space<vmem>>, vector<4x128xf32>
    %c48 = arith.constant 48 : index
    %c0_45 = arith.constant 0 : index
    %32 = vector.load %arg10[%c48, %c0_45] : memref<64x128xf32, #tpu.memory_space<vmem>>, vector<4x128xf32>
    tpu.vector_store %arg10[%c48, %c0_45], %31 {strides = array<i32>} : memref<64x128xf32, #tpu.memory_space<vmem>>, vector<4x128xf32>,
    %c4_46 = arith.constant 4 : index
    %c128_47 = arith.constant 128 : index
    %33 = vector.load %arg9[%c4_46, %c128_47] : memref<32x256xf32, #tpu.memory_space<vmem>>, vector<4x128xf32>
    %c52 = arith.constant 52 : index
    %c0_48 = arith.constant 0 : index
    %34 = vector.load %arg10[%c52, %c0_48] : memref<64x128xf32, #tpu.memory_space<vmem>>, vector<4x128xf32>
    tpu.vector_store %arg10[%c52, %c0_48], %33 {strides = array<i32>} : memref<64x128xf32, #tpu.memory_space<vmem>>, vector<4x128xf32>,
    %c28_49 = arith.constant 28 : index
    %c0_50 = arith.constant 0 : index
    %35 = vector.load %arg9[%c28_49, %c0_50] : memref<32x256xf32, #tpu.memory_space<vmem>>, vector<4x128xf32>
    %c56 = arith.constant 56 : index
    %c0_51 = arith.constant 0 : index
    %36 = vector.load %arg10[%c56, %c0_51] : memref<64x128xf32, #tpu.memory_space<vmem>>, vector<4x128xf32>
    tpu.vector_store %arg10[%c56, %c0_51], %35 {strides = array<i32>} : memref<64x128xf32, #tpu.memory_space<vmem>>, vector<4x128xf32>,
    %c0_52 = arith.constant 0 : index
    %c128_53 = arith.constant 128 : index
    %37 = vector.load %arg9[%c0_52, %c128_53] : memref<32x256xf32, #tpu.memory_space<vmem>>, vector<4x128xf32>
    %c60 = arith.constant 60 : index
    %c0_54 = arith.constant 0 : index
    %38 = vector.load %arg10[%c60, %c0_54] : memref<64x128xf32, #tpu.memory_space<vmem>>, vector<4x128xf32>
    tpu.vector_store %arg10[%c60, %c0_54], %37 {strides = array<i32>} : memref<64x128xf32, #tpu.memory_space<vmem>>, vector<4x128xf32>,
    %c0_55 = arith.constant 0 : index
    %c0_56 = arith.constant 0 : index
    %39 = vector.load %arg4[%c0_55, %c0_56] : memref<32x256xf32, #tpu.memory_space<vmem>>, vector<32x256xf32>
    %c0_57 = arith.constant 0 : index
    %c0_58 = arith.constant 0 : index
    %40 = vector.load %arg5[%c0_57, %c0_58] : memref<8x1xi32, #tpu.memory_space<vmem>>, vector<8x1xi32>
    %41 = tpu.iota {dimensions = array<i32: 0>} : vector<8x1xi32>
    %c4_i32 = arith.constant 4 : i32
    %42 = vector.broadcast %c4_i32 : i32 to vector<8x1xi32>
    %43 = arith.cmpi slt, %41, %42 : vector<8x1xi32>
    %cst_59 = arith.constant 0.000000e+00 : f32
    %44 = vector.broadcast %cst_59 : f32 to vector<8x32xf32>
    %c0_i32 = arith.constant 0 : i32
    %c7_i32 = arith.constant 7 : i32
    %45 = arith.subi %c7_i32, %c0_i32 : i32
    %c8_i32 = arith.constant 8 : i32
    %46 = arith.muli %c0_i32, %c8_i32 : i32
    %47 = tpu.assume_multiple %46, 8 : i32
    %48 = arith.index_cast %47 : i32 to index
    %c0_60 = arith.constant 0 : index
    %49 = vector.load %arg10[%48, %c0_60] : memref<64x128xf32, #tpu.memory_space<vmem>>, vector<8x128xf32>
    %cst_61 = arith.constant dense<0.000000e+00> : vector<8x256xf32>
    %50 = tpu.matmul %44, %39, %cst_61 {dimension_numbers = #tpu.dot_dimension_numbers<[1], [0], [0], [1], [0, 0, 1, 1], [], []>} : vector<8x32xf32>, vector<32x256xf32>, vector<8x256xf32> -> vector<8x256xf32>
    %51 = vector.extract_strided_slice %50 {offsets = [0, 0], sizes = [8, 128], strides = [1, 1]} : vector<8x256xf32> to vector<8x128xf32>
    %52 = vector.extract_strided_slice %50 {offsets = [0, 128], sizes = [8, 128], strides = [1, 1]} : vector<8x256xf32> to vector<8x128xf32>
    %53 = vector.shape_cast %43 : vector<8x1xi1> to vector<8x1xi1>
    %54 = vector.broadcast %53 : vector<8x1xi1> to vector<8x128xi1>
    %55 = arith.select %54, %51, %52 : vector<8x128xi1>, vector<8x128xf32>
    %56 = arith.addf %49, %55 : vector<8x128xf32>
    %57 = arith.negf %56 : vector<8x128xf32>
    %58 = math.exp %57 : vector<8x128xf32>
    %cst_62 = arith.constant 1.000000e+00 : f32
    %59 = vector.broadcast %cst_62 : f32 to vector<8x128xf32>
    %60 = arith.addf %59, %58 : vector<8x128xf32>
    %61 = arith.divf %59, %60 : vector<8x128xf32>
    %62 = vector.extract_strided_slice %61 {offsets = [0, 0], sizes = [8, 32], strides = [1, 1]} : vector<8x128xf32> to vector<8x32xf32>
    %63 = vector.extract_strided_slice %61 {offsets = [0, 32], sizes = [8, 32], strides = [1, 1]} : vector<8x128xf32> to vector<8x32xf32>
    %64 = vector.extract_strided_slice %61 {offsets = [0, 96], sizes = [8, 32], strides = [1, 1]} : vector<8x128xf32> to vector<8x32xf32>
    %65 = vector.extract_strided_slice %56 {offsets = [0, 64], sizes = [8, 32], strides = [1, 1]} : vector<8x128xf32> to vector<8x32xf32>
    %66 = math.tanh %65 : vector<8x32xf32>
    %67 = arith.mulf %63, %44 : vector<8x32xf32>
    %68 = arith.mulf %62, %66 : vector<8x32xf32>
    %69 = arith.addf %67, %68 : vector<8x32xf32>
    %70 = math.tanh %69 : vector<8x32xf32>
    %71 = arith.mulf %64, %70 : vector<8x32xf32>
    %72 = vector.broadcast %c0_i32 : i32 to vector<8x1xi32>
    %73 = vector.broadcast %45 : i32 to vector<8x1xi32>
    %74 = arith.select %43, %72, %73 : vector<8x1xi1>, vector<8x1xi32>
    %75 = arith.cmpi slt, %74, %40 : vector<8x1xi32>
    %76 = vector.shape_cast %75 : vector<8x1xi1> to vector<8x1xi1>
    %77 = vector.broadcast %76 : vector<8x1xi1> to vector<8x32xi1>
    %78 = arith.select %77, %71, %44 : vector<8x32xi1>, vector<8x32xf32>
    %79 = vector.shape_cast %75 : vector<8x1xi1> to vector<8x1xi1>
    %80 = vector.broadcast %79 : vector<8x1xi1> to vector<8x32xi1>
    %81 = arith.select %80, %69, %44 : vector<8x32xi1>, vector<8x32xf32>
    %82 = vector.extract_strided_slice %75 {offsets = [0, 0], sizes = [4, 1], strides = [1, 1]} : vector<8x1xi1> to vector<4x1xi1>
    %83 = vector.extract_strided_slice %71 {offsets = [0, 0], sizes = [4, 32], strides = [1, 1]} : vector<8x32xf32> to vector<4x32xf32>
    %cst_63 = arith.constant 0.000000e+00 : f32
    %84 = vector.shape_cast %82 : vector<4x1xi1> to vector<4x1xi1>
    %85 = vector.broadcast %84 : vector<4x1xi1> to vector<4x32xi1>
    %86 = vector.broadcast %cst_63 : f32 to vector<4x32xf32>
    %87 = arith.select %85, %83, %86 : vector<4x32xi1>, vector<4x32xf32>
    %88 = arith.index_cast %c0_i32 : i32 to index
    %c0_64 = arith.constant 0 : index
    %c0_65 = arith.constant 0 : index
    %89 = vector.load %arg6[%88, %c0_64, %c0_65] : memref<8x4x64xf32, #tpu.memory_space<vmem>>, vector<1x4x32xf32>
    %90 = vector.shape_cast %89 : vector<1x4x32xf32> to vector<4x32xf32>
    %91 = vector.shape_cast %87 : vector<4x32xf32> to vector<1x4x32xf32>
    tpu.vector_store %arg6[%88, %c0_64, %c0_65], %91 {strides = array<i32>} : memref<8x4x64xf32, #tpu.memory_space<vmem>>, vector<1x4x32xf32>,
    %92 = vector.extract_strided_slice %75 {offsets = [4, 0], sizes = [4, 1], strides = [1, 1]} : vector<8x1xi1> to vector<4x1xi1>
    %93 = vector.extract_strided_slice %71 {offsets = [4, 0], sizes = [4, 32], strides = [1, 1]} : vector<8x32xf32> to vector<4x32xf32>
    %cst_66 = arith.constant 0.000000e+00 : f32
    %94 = vector.shape_cast %92 : vector<4x1xi1> to vector<4x1xi1>
    %95 = vector.broadcast %94 : vector<4x1xi1> to vector<4x32xi1>
    %96 = vector.broadcast %cst_66 : f32 to vector<4x32xf32>
    %97 = arith.select %95, %93, %96 : vector<4x32xi1>, vector<4x32xf32>
    %98 = arith.index_cast %45 : i32 to index
    %c0_67 = arith.constant 0 : index
    %c32_68 = arith.constant 32 : index
    %99 = vector.load %arg6[%98, %c0_67, %c32_68] : memref<8x4x64xf32, #tpu.memory_space<vmem>>, vector<1x4x32xf32>
    %100 = vector.shape_cast %99 : vector<1x4x32xf32> to vector<4x32xf32>
    %101 = vector.shape_cast %97 : vector<4x32xf32> to vector<1x4x32xf32>
    tpu.vector_store %arg6[%98, %c0_67, %c32_68], %101 {strides = array<i32>} : memref<8x4x64xf32, #tpu.memory_space<vmem>>, vector<1x4x32xf32>,
    %c1_i32 = arith.constant 1 : i32
    %c7_i32_69 = arith.constant 7 : i32
    %102 = arith.subi %c7_i32_69, %c1_i32 : i32
    %c8_i32_70 = arith.constant 8 : i32
    %103 = arith.muli %c1_i32, %c8_i32_70 : i32
    %104 = tpu.assume_multiple %103, 8 : i32
    %105 = arith.index_cast %104 : i32 to index
    %c0_71 = arith.constant 0 : index
    %106 = vector.load %arg10[%105, %c0_71] : memref<64x128xf32, #tpu.memory_space<vmem>>, vector<8x128xf32>
    %cst_72 = arith.constant dense<0.000000e+00> : vector<8x256xf32>
    %107 = tpu.matmul %78, %39, %cst_72 {dimension_numbers = #tpu.dot_dimension_numbers<[1], [0], [0], [1], [0, 0, 1, 1], [], []>} : vector<8x32xf32>, vector<32x256xf32>, vector<8x256xf32> -> vector<8x256xf32>
    %108 = vector.extract_strided_slice %107 {offsets = [0, 0], sizes = [8, 128], strides = [1, 1]} : vector<8x256xf32> to vector<8x128xf32>
    %109 = vector.extract_strided_slice %107 {offsets = [0, 128], sizes = [8, 128], strides = [1, 1]} : vector<8x256xf32> to vector<8x128xf32>
    %110 = vector.shape_cast %43 : vector<8x1xi1> to vector<8x1xi1>
    %111 = vector.broadcast %110 : vector<8x1xi1> to vector<8x128xi1>
    %112 = arith.select %111, %108, %109 : vector<8x128xi1>, vector<8x128xf32>
    %113 = arith.addf %106, %112 : vector<8x128xf32>
    %114 = arith.negf %113 : vector<8x128xf32>
    %115 = math.exp %114 : vector<8x128xf32>
    %cst_73 = arith.constant 1.000000e+00 : f32
    %116 = vector.broadcast %cst_73 : f32 to vector<8x128xf32>
    %117 = arith.addf %116, %115 : vector<8x128xf32>
    %118 = arith.divf %116, %117 : vector<8x128xf32>
    %119 = vector.extract_strided_slice %118 {offsets = [0, 0], sizes = [8, 32], strides = [1, 1]} : vector<8x128xf32> to vector<8x32xf32>
    %120 = vector.extract_strided_slice %118 {offsets = [0, 32], sizes = [8, 32], strides = [1, 1]} : vector<8x128xf32> to vector<8x32xf32>
    %121 = vector.extract_strided_slice %118 {offsets = [0, 96], sizes = [8, 32], strides = [1, 1]} : vector<8x128xf32> to vector<8x32xf32>
    %122 = vector.extract_strided_slice %113 {offsets = [0, 64], sizes = [8, 32], strides = [1, 1]} : vector<8x128xf32> to vector<8x32xf32>
    %123 = math.tanh %122 : vector<8x32xf32>
    %124 = arith.mulf %120, %81 : vector<8x32xf32>
    %125 = arith.mulf %119, %123 : vector<8x32xf32>
    %126 = arith.addf %124, %125 : vector<8x32xf32>
    %127 = math.tanh %126 : vector<8x32xf32>
    %128 = arith.mulf %121, %127 : vector<8x32xf32>
    %129 = vector.broadcast %c1_i32 : i32 to vector<8x1xi32>
    %130 = vector.broadcast %102 : i32 to vector<8x1xi32>
    %131 = arith.select %43, %129, %130 : vector<8x1xi1>, vector<8x1xi32>
    %132 = arith.cmpi slt, %131, %40 : vector<8x1xi32>
    %133 = vector.shape_cast %132 : vector<8x1xi1> to vector<8x1xi1>
    %134 = vector.broadcast %133 : vector<8x1xi1> to vector<8x32xi1>
    %135 = arith.select %134, %128, %78 : vector<8x32xi1>, vector<8x32xf32>
    %136 = vector.shape_cast %132 : vector<8x1xi1> to vector<8x1xi1>
    %137 = vector.broadcast %136 : vector<8x1xi1> to vector<8x32xi1>
    %138 = arith.select %137, %126, %81 : vector<8x32xi1>, vector<8x32xf32>
    %139 = vector.extract_strided_slice %132 {offsets = [0, 0], sizes = [4, 1], strides = [1, 1]} : vector<8x1xi1> to vector<4x1xi1>
    %140 = vector.extract_strided_slice %128 {offsets = [0, 0], sizes = [4, 32], strides = [1, 1]} : vector<8x32xf32> to vector<4x32xf32>
    %cst_74 = arith.constant 0.000000e+00 : f32
    %141 = vector.shape_cast %139 : vector<4x1xi1> to vector<4x1xi1>
    %142 = vector.broadcast %141 : vector<4x1xi1> to vector<4x32xi1>
    %143 = vector.broadcast %cst_74 : f32 to vector<4x32xf32>
    %144 = arith.select %142, %140, %143 : vector<4x32xi1>, vector<4x32xf32>
    %145 = arith.index_cast %c1_i32 : i32 to index
    %c0_75 = arith.constant 0 : index
    %c0_76 = arith.constant 0 : index
    %146 = vector.load %arg6[%145, %c0_75, %c0_76] : memref<8x4x64xf32, #tpu.memory_space<vmem>>, vector<1x4x32xf32>
    %147 = vector.shape_cast %146 : vector<1x4x32xf32> to vector<4x32xf32>
    %148 = vector.shape_cast %144 : vector<4x32xf32> to vector<1x4x32xf32>
    tpu.vector_store %arg6[%145, %c0_75, %c0_76], %148 {strides = array<i32>} : memref<8x4x64xf32, #tpu.memory_space<vmem>>, vector<1x4x32xf32>,
    %149 = vector.extract_strided_slice %132 {offsets = [4, 0], sizes = [4, 1], strides = [1, 1]} : vector<8x1xi1> to vector<4x1xi1>
    %150 = vector.extract_strided_slice %128 {offsets = [4, 0], sizes = [4, 32], strides = [1, 1]} : vector<8x32xf32> to vector<4x32xf32>
    %cst_77 = arith.constant 0.000000e+00 : f32
    %151 = vector.shape_cast %149 : vector<4x1xi1> to vector<4x1xi1>
    %152 = vector.broadcast %151 : vector<4x1xi1> to vector<4x32xi1>
    %153 = vector.broadcast %cst_77 : f32 to vector<4x32xf32>
    %154 = arith.select %152, %150, %153 : vector<4x32xi1>, vector<4x32xf32>
    %155 = arith.index_cast %102 : i32 to index
    %c0_78 = arith.constant 0 : index
    %c32_79 = arith.constant 32 : index
    %156 = vector.load %arg6[%155, %c0_78, %c32_79] : memref<8x4x64xf32, #tpu.memory_space<vmem>>, vector<1x4x32xf32>
    %157 = vector.shape_cast %156 : vector<1x4x32xf32> to vector<4x32xf32>
    %158 = vector.shape_cast %154 : vector<4x32xf32> to vector<1x4x32xf32>
    tpu.vector_store %arg6[%155, %c0_78, %c32_79], %158 {strides = array<i32>} : memref<8x4x64xf32, #tpu.memory_space<vmem>>, vector<1x4x32xf32>,
    %c2_i32 = arith.constant 2 : i32
    %c7_i32_80 = arith.constant 7 : i32
    %159 = arith.subi %c7_i32_80, %c2_i32 : i32
    %c8_i32_81 = arith.constant 8 : i32
    %160 = arith.muli %c2_i32, %c8_i32_81 : i32
    %161 = tpu.assume_multiple %160, 8 : i32
    %162 = arith.index_cast %161 : i32 to index
    %c0_82 = arith.constant 0 : index
    %163 = vector.load %arg10[%162, %c0_82] : memref<64x128xf32, #tpu.memory_space<vmem>>, vector<8x128xf32>
    %cst_83 = arith.constant dense<0.000000e+00> : vector<8x256xf32>
    %164 = tpu.matmul %135, %39, %cst_83 {dimension_numbers = #tpu.dot_dimension_numbers<[1], [0], [0], [1], [0, 0, 1, 1], [], []>} : vector<8x32xf32>, vector<32x256xf32>, vector<8x256xf32> -> vector<8x256xf32>
    %165 = vector.extract_strided_slice %164 {offsets = [0, 0], sizes = [8, 128], strides = [1, 1]} : vector<8x256xf32> to vector<8x128xf32>
    %166 = vector.extract_strided_slice %164 {offsets = [0, 128], sizes = [8, 128], strides = [1, 1]} : vector<8x256xf32> to vector<8x128xf32>
    %167 = vector.shape_cast %43 : vector<8x1xi1> to vector<8x1xi1>
    %168 = vector.broadcast %167 : vector<8x1xi1> to vector<8x128xi1>
    %169 = arith.select %168, %165, %166 : vector<8x128xi1>, vector<8x128xf32>
    %170 = arith.addf %163, %169 : vector<8x128xf32>
    %171 = arith.negf %170 : vector<8x128xf32>
    %172 = math.exp %171 : vector<8x128xf32>
    %cst_84 = arith.constant 1.000000e+00 : f32
    %173 = vector.broadcast %cst_84 : f32 to vector<8x128xf32>
    %174 = arith.addf %173, %172 : vector<8x128xf32>
    %175 = arith.divf %173, %174 : vector<8x128xf32>
    %176 = vector.extract_strided_slice %175 {offsets = [0, 0], sizes = [8, 32], strides = [1, 1]} : vector<8x128xf32> to vector<8x32xf32>
    %177 = vector.extract_strided_slice %175 {offsets = [0, 32], sizes = [8, 32], strides = [1, 1]} : vector<8x128xf32> to vector<8x32xf32>
    %178 = vector.extract_strided_slice %175 {offsets = [0, 96], sizes = [8, 32], strides = [1, 1]} : vector<8x128xf32> to vector<8x32xf32>
    %179 = vector.extract_strided_slice %170 {offsets = [0, 64], sizes = [8, 32], strides = [1, 1]} : vector<8x128xf32> to vector<8x32xf32>
    %180 = math.tanh %179 : vector<8x32xf32>
    %181 = arith.mulf %177, %138 : vector<8x32xf32>
    %182 = arith.mulf %176, %180 : vector<8x32xf32>
    %183 = arith.addf %181, %182 : vector<8x32xf32>
    %184 = math.tanh %183 : vector<8x32xf32>
    %185 = arith.mulf %178, %184 : vector<8x32xf32>
    %186 = vector.broadcast %c2_i32 : i32 to vector<8x1xi32>
    %187 = vector.broadcast %159 : i32 to vector<8x1xi32>
    %188 = arith.select %43, %186, %187 : vector<8x1xi1>, vector<8x1xi32>
    %189 = arith.cmpi slt, %188, %40 : vector<8x1xi32>
    %190 = vector.shape_cast %189 : vector<8x1xi1> to vector<8x1xi1>
    %191 = vector.broadcast %190 : vector<8x1xi1> to vector<8x32xi1>
    %192 = arith.select %191, %185, %135 : vector<8x32xi1>, vector<8x32xf32>
    %193 = vector.shape_cast %189 : vector<8x1xi1> to vector<8x1xi1>
    %194 = vector.broadcast %193 : vector<8x1xi1> to vector<8x32xi1>
    %195 = arith.select %194, %183, %138 : vector<8x32xi1>, vector<8x32xf32>
    %196 = vector.extract_strided_slice %189 {offsets = [0, 0], sizes = [4, 1], strides = [1, 1]} : vector<8x1xi1> to vector<4x1xi1>
    %197 = vector.extract_strided_slice %185 {offsets = [0, 0], sizes = [4, 32], strides = [1, 1]} : vector<8x32xf32> to vector<4x32xf32>
    %cst_85 = arith.constant 0.000000e+00 : f32
    %198 = vector.shape_cast %196 : vector<4x1xi1> to vector<4x1xi1>
    %199 = vector.broadcast %198 : vector<4x1xi1> to vector<4x32xi1>
    %200 = vector.broadcast %cst_85 : f32 to vector<4x32xf32>
    %201 = arith.select %199, %197, %200 : vector<4x32xi1>, vector<4x32xf32>
    %202 = arith.index_cast %c2_i32 : i32 to index
    %c0_86 = arith.constant 0 : index
    %c0_87 = arith.constant 0 : index
    %203 = vector.load %arg6[%202, %c0_86, %c0_87] : memref<8x4x64xf32, #tpu.memory_space<vmem>>, vector<1x4x32xf32>
    %204 = vector.shape_cast %203 : vector<1x4x32xf32> to vector<4x32xf32>
    %205 = vector.shape_cast %201 : vector<4x32xf32> to vector<1x4x32xf32>
    tpu.vector_store %arg6[%202, %c0_86, %c0_87], %205 {strides = array<i32>} : memref<8x4x64xf32, #tpu.memory_space<vmem>>, vector<1x4x32xf32>,
    %206 = vector.extract_strided_slice %189 {offsets = [4, 0], sizes = [4, 1], strides = [1, 1]} : vector<8x1xi1> to vector<4x1xi1>
    %207 = vector.extract_strided_slice %185 {offsets = [4, 0], sizes = [4, 32], strides = [1, 1]} : vector<8x32xf32> to vector<4x32xf32>
    %cst_88 = arith.constant 0.000000e+00 : f32
    %208 = vector.shape_cast %206 : vector<4x1xi1> to vector<4x1xi1>
    %209 = vector.broadcast %208 : vector<4x1xi1> to vector<4x32xi1>
    %210 = vector.broadcast %cst_88 : f32 to vector<4x32xf32>
    %211 = arith.select %209, %207, %210 : vector<4x32xi1>, vector<4x32xf32>
    %212 = arith.index_cast %159 : i32 to index
    %c0_89 = arith.constant 0 : index
    %c32_90 = arith.constant 32 : index
    %213 = vector.load %arg6[%212, %c0_89, %c32_90] : memref<8x4x64xf32, #tpu.memory_space<vmem>>, vector<1x4x32xf32>
    %214 = vector.shape_cast %213 : vector<1x4x32xf32> to vector<4x32xf32>
    %215 = vector.shape_cast %211 : vector<4x32xf32> to vector<1x4x32xf32>
    tpu.vector_store %arg6[%212, %c0_89, %c32_90], %215 {strides = array<i32>} : memref<8x4x64xf32, #tpu.memory_space<vmem>>, vector<1x4x32xf32>,
    %c3_i32 = arith.constant 3 : i32
    %c7_i32_91 = arith.constant 7 : i32
    %216 = arith.subi %c7_i32_91, %c3_i32 : i32
    %c8_i32_92 = arith.constant 8 : i32
    %217 = arith.muli %c3_i32, %c8_i32_92 : i32
    %218 = tpu.assume_multiple %217, 8 : i32
    %219 = arith.index_cast %218 : i32 to index
    %c0_93 = arith.constant 0 : index
    %220 = vector.load %arg10[%219, %c0_93] : memref<64x128xf32, #tpu.memory_space<vmem>>, vector<8x128xf32>
    %cst_94 = arith.constant dense<0.000000e+00> : vector<8x256xf32>
    %221 = tpu.matmul %192, %39, %cst_94 {dimension_numbers = #tpu.dot_dimension_numbers<[1], [0], [0], [1], [0, 0, 1, 1], [], []>} : vector<8x32xf32>, vector<32x256xf32>, vector<8x256xf32> -> vector<8x256xf32>
    %222 = vector.extract_strided_slice %221 {offsets = [0, 0], sizes = [8, 128], strides = [1, 1]} : vector<8x256xf32> to vector<8x128xf32>
    %223 = vector.extract_strided_slice %221 {offsets = [0, 128], sizes = [8, 128], strides = [1, 1]} : vector<8x256xf32> to vector<8x128xf32>
    %224 = vector.shape_cast %43 : vector<8x1xi1> to vector<8x1xi1>
    %225 = vector.broadcast %224 : vector<8x1xi1> to vector<8x128xi1>
    %226 = arith.select %225, %222, %223 : vector<8x128xi1>, vector<8x128xf32>
    %227 = arith.addf %220, %226 : vector<8x128xf32>
    %228 = arith.negf %227 : vector<8x128xf32>
    %229 = math.exp %228 : vector<8x128xf32>
    %cst_95 = arith.constant 1.000000e+00 : f32
    %230 = vector.broadcast %cst_95 : f32 to vector<8x128xf32>
    %231 = arith.addf %230, %229 : vector<8x128xf32>
    %232 = arith.divf %230, %231 : vector<8x128xf32>
    %233 = vector.extract_strided_slice %232 {offsets = [0, 0], sizes = [8, 32], strides = [1, 1]} : vector<8x128xf32> to vector<8x32xf32>
    %234 = vector.extract_strided_slice %232 {offsets = [0, 32], sizes = [8, 32], strides = [1, 1]} : vector<8x128xf32> to vector<8x32xf32>
    %235 = vector.extract_strided_slice %232 {offsets = [0, 96], sizes = [8, 32], strides = [1, 1]} : vector<8x128xf32> to vector<8x32xf32>
    %236 = vector.extract_strided_slice %227 {offsets = [0, 64], sizes = [8, 32], strides = [1, 1]} : vector<8x128xf32> to vector<8x32xf32>
    %237 = math.tanh %236 : vector<8x32xf32>
    %238 = arith.mulf %234, %195 : vector<8x32xf32>
    %239 = arith.mulf %233, %237 : vector<8x32xf32>
    %240 = arith.addf %238, %239 : vector<8x32xf32>
    %241 = math.tanh %240 : vector<8x32xf32>
    %242 = arith.mulf %235, %241 : vector<8x32xf32>
    %243 = vector.broadcast %c3_i32 : i32 to vector<8x1xi32>
    %244 = vector.broadcast %216 : i32 to vector<8x1xi32>
    %245 = arith.select %43, %243, %244 : vector<8x1xi1>, vector<8x1xi32>
    %246 = arith.cmpi slt, %245, %40 : vector<8x1xi32>
    %247 = vector.shape_cast %246 : vector<8x1xi1> to vector<8x1xi1>
    %248 = vector.broadcast %247 : vector<8x1xi1> to vector<8x32xi1>
    %249 = arith.select %248, %242, %192 : vector<8x32xi1>, vector<8x32xf32>
    %250 = vector.shape_cast %246 : vector<8x1xi1> to vector<8x1xi1>
    %251 = vector.broadcast %250 : vector<8x1xi1> to vector<8x32xi1>
    %252 = arith.select %251, %240, %195 : vector<8x32xi1>, vector<8x32xf32>
    %253 = vector.extract_strided_slice %246 {offsets = [0, 0], sizes = [4, 1], strides = [1, 1]} : vector<8x1xi1> to vector<4x1xi1>
    %254 = vector.extract_strided_slice %242 {offsets = [0, 0], sizes = [4, 32], strides = [1, 1]} : vector<8x32xf32> to vector<4x32xf32>
    %cst_96 = arith.constant 0.000000e+00 : f32
    %255 = vector.shape_cast %253 : vector<4x1xi1> to vector<4x1xi1>
    %256 = vector.broadcast %255 : vector<4x1xi1> to vector<4x32xi1>
    %257 = vector.broadcast %cst_96 : f32 to vector<4x32xf32>
    %258 = arith.select %256, %254, %257 : vector<4x32xi1>, vector<4x32xf32>
    %259 = arith.index_cast %c3_i32 : i32 to index
    %c0_97 = arith.constant 0 : index
    %c0_98 = arith.constant 0 : index
    %260 = vector.load %arg6[%259, %c0_97, %c0_98] : memref<8x4x64xf32, #tpu.memory_space<vmem>>, vector<1x4x32xf32>
    %261 = vector.shape_cast %260 : vector<1x4x32xf32> to vector<4x32xf32>
    %262 = vector.shape_cast %258 : vector<4x32xf32> to vector<1x4x32xf32>
    tpu.vector_store %arg6[%259, %c0_97, %c0_98], %262 {strides = array<i32>} : memref<8x4x64xf32, #tpu.memory_space<vmem>>, vector<1x4x32xf32>,
    %263 = vector.extract_strided_slice %246 {offsets = [4, 0], sizes = [4, 1], strides = [1, 1]} : vector<8x1xi1> to vector<4x1xi1>
    %264 = vector.extract_strided_slice %242 {offsets = [4, 0], sizes = [4, 32], strides = [1, 1]} : vector<8x32xf32> to vector<4x32xf32>
    %cst_99 = arith.constant 0.000000e+00 : f32
    %265 = vector.shape_cast %263 : vector<4x1xi1> to vector<4x1xi1>
    %266 = vector.broadcast %265 : vector<4x1xi1> to vector<4x32xi1>
    %267 = vector.broadcast %cst_99 : f32 to vector<4x32xf32>
    %268 = arith.select %266, %264, %267 : vector<4x32xi1>, vector<4x32xf32>
    %269 = arith.index_cast %216 : i32 to index
    %c0_100 = arith.constant 0 : index
    %c32_101 = arith.constant 32 : index
    %270 = vector.load %arg6[%269, %c0_100, %c32_101] : memref<8x4x64xf32, #tpu.memory_space<vmem>>, vector<1x4x32xf32>
    %271 = vector.shape_cast %270 : vector<1x4x32xf32> to vector<4x32xf32>
    %272 = vector.shape_cast %268 : vector<4x32xf32> to vector<1x4x32xf32>
    tpu.vector_store %arg6[%269, %c0_100, %c32_101], %272 {strides = array<i32>} : memref<8x4x64xf32, #tpu.memory_space<vmem>>, vector<1x4x32xf32>,
    %c4_i32_102 = arith.constant 4 : i32
    %c7_i32_103 = arith.constant 7 : i32
    %273 = arith.subi %c7_i32_103, %c4_i32_102 : i32
    %c8_i32_104 = arith.constant 8 : i32
    %274 = arith.muli %c4_i32_102, %c8_i32_104 : i32
    %275 = tpu.assume_multiple %274, 8 : i32
    %276 = arith.index_cast %275 : i32 to index
    %c0_105 = arith.constant 0 : index
    %277 = vector.load %arg10[%276, %c0_105] : memref<64x128xf32, #tpu.memory_space<vmem>>, vector<8x128xf32>
    %cst_106 = arith.constant dense<0.000000e+00> : vector<8x256xf32>
    %278 = tpu.matmul %249, %39, %cst_106 {dimension_numbers = #tpu.dot_dimension_numbers<[1], [0], [0], [1], [0, 0, 1, 1], [], []>} : vector<8x32xf32>, vector<32x256xf32>, vector<8x256xf32> -> vector<8x256xf32>
    %279 = vector.extract_strided_slice %278 {offsets = [0, 0], sizes = [8, 128], strides = [1, 1]} : vector<8x256xf32> to vector<8x128xf32>
    %280 = vector.extract_strided_slice %278 {offsets = [0, 128], sizes = [8, 128], strides = [1, 1]} : vector<8x256xf32> to vector<8x128xf32>
    %281 = vector.shape_cast %43 : vector<8x1xi1> to vector<8x1xi1>
    %282 = vector.broadcast %281 : vector<8x1xi1> to vector<8x128xi1>
    %283 = arith.select %282, %279, %280 : vector<8x128xi1>, vector<8x128xf32>
    %284 = arith.addf %277, %283 : vector<8x128xf32>
    %285 = arith.negf %284 : vector<8x128xf32>
    %286 = math.exp %285 : vector<8x128xf32>
    %cst_107 = arith.constant 1.000000e+00 : f32
    %287 = vector.broadcast %cst_107 : f32 to vector<8x128xf32>
    %288 = arith.addf %287, %286 : vector<8x128xf32>
    %289 = arith.divf %287, %288 : vector<8x128xf32>
    %290 = vector.extract_strided_slice %289 {offsets = [0, 0], sizes = [8, 32], strides = [1, 1]} : vector<8x128xf32> to vector<8x32xf32>
    %291 = vector.extract_strided_slice %289 {offsets = [0, 32], sizes = [8, 32], strides = [1, 1]} : vector<8x128xf32> to vector<8x32xf32>
    %292 = vector.extract_strided_slice %289 {offsets = [0, 96], sizes = [8, 32], strides = [1, 1]} : vector<8x128xf32> to vector<8x32xf32>
    %293 = vector.extract_strided_slice %284 {offsets = [0, 64], sizes = [8, 32], strides = [1, 1]} : vector<8x128xf32> to vector<8x32xf32>
    %294 = math.tanh %293 : vector<8x32xf32>
    %295 = arith.mulf %291, %252 : vector<8x32xf32>
    %296 = arith.mulf %290, %294 : vector<8x32xf32>
    %297 = arith.addf %295, %296 : vector<8x32xf32>
    %298 = math.tanh %297 : vector<8x32xf32>
    %299 = arith.mulf %292, %298 : vector<8x32xf32>
    %300 = vector.broadcast %c4_i32_102 : i32 to vector<8x1xi32>
    %301 = vector.broadcast %273 : i32 to vector<8x1xi32>
    %302 = arith.select %43, %300, %301 : vector<8x1xi1>, vector<8x1xi32>
    %303 = arith.cmpi slt, %302, %40 : vector<8x1xi32>
    %304 = vector.shape_cast %303 : vector<8x1xi1> to vector<8x1xi1>
    %305 = vector.broadcast %304 : vector<8x1xi1> to vector<8x32xi1>
    %306 = arith.select %305, %299, %249 : vector<8x32xi1>, vector<8x32xf32>
    %307 = vector.shape_cast %303 : vector<8x1xi1> to vector<8x1xi1>
    %308 = vector.broadcast %307 : vector<8x1xi1> to vector<8x32xi1>
    %309 = arith.select %308, %297, %252 : vector<8x32xi1>, vector<8x32xf32>
    %310 = vector.extract_strided_slice %303 {offsets = [0, 0], sizes = [4, 1], strides = [1, 1]} : vector<8x1xi1> to vector<4x1xi1>
    %311 = vector.extract_strided_slice %299 {offsets = [0, 0], sizes = [4, 32], strides = [1, 1]} : vector<8x32xf32> to vector<4x32xf32>
    %cst_108 = arith.constant 0.000000e+00 : f32
    %312 = vector.shape_cast %310 : vector<4x1xi1> to vector<4x1xi1>
    %313 = vector.broadcast %312 : vector<4x1xi1> to vector<4x32xi1>
    %314 = vector.broadcast %cst_108 : f32 to vector<4x32xf32>
    %315 = arith.select %313, %311, %314 : vector<4x32xi1>, vector<4x32xf32>
    %316 = arith.index_cast %c4_i32_102 : i32 to index
    %c0_109 = arith.constant 0 : index
    %c0_110 = arith.constant 0 : index
    %317 = vector.load %arg6[%316, %c0_109, %c0_110] : memref<8x4x64xf32, #tpu.memory_space<vmem>>, vector<1x4x32xf32>
    %318 = vector.shape_cast %317 : vector<1x4x32xf32> to vector<4x32xf32>
    %319 = vector.shape_cast %315 : vector<4x32xf32> to vector<1x4x32xf32>
    tpu.vector_store %arg6[%316, %c0_109, %c0_110], %319 {strides = array<i32>} : memref<8x4x64xf32, #tpu.memory_space<vmem>>, vector<1x4x32xf32>,
    %320 = vector.extract_strided_slice %303 {offsets = [4, 0], sizes = [4, 1], strides = [1, 1]} : vector<8x1xi1> to vector<4x1xi1>
    %321 = vector.extract_strided_slice %299 {offsets = [4, 0], sizes = [4, 32], strides = [1, 1]} : vector<8x32xf32> to vector<4x32xf32>
    %cst_111 = arith.constant 0.000000e+00 : f32
    %322 = vector.shape_cast %320 : vector<4x1xi1> to vector<4x1xi1>
    %323 = vector.broadcast %322 : vector<4x1xi1> to vector<4x32xi1>
    %324 = vector.broadcast %cst_111 : f32 to vector<4x32xf32>
    %325 = arith.select %323, %321, %324 : vector<4x32xi1>, vector<4x32xf32>
    %326 = arith.index_cast %273 : i32 to index
    %c0_112 = arith.constant 0 : index
    %c32_113 = arith.constant 32 : index
    %327 = vector.load %arg6[%326, %c0_112, %c32_113] : memref<8x4x64xf32, #tpu.memory_space<vmem>>, vector<1x4x32xf32>
    %328 = vector.shape_cast %327 : vector<1x4x32xf32> to vector<4x32xf32>
    %329 = vector.shape_cast %325 : vector<4x32xf32> to vector<1x4x32xf32>
    tpu.vector_store %arg6[%326, %c0_112, %c32_113], %329 {strides = array<i32>} : memref<8x4x64xf32, #tpu.memory_space<vmem>>, vector<1x4x32xf32>,
    %c5_i32 = arith.constant 5 : i32
    %c7_i32_114 = arith.constant 7 : i32
    %330 = arith.subi %c7_i32_114, %c5_i32 : i32
    %c8_i32_115 = arith.constant 8 : i32
    %331 = arith.muli %c5_i32, %c8_i32_115 : i32
    %332 = tpu.assume_multiple %331, 8 : i32
    %333 = arith.index_cast %332 : i32 to index
    %c0_116 = arith.constant 0 : index
    %334 = vector.load %arg10[%333, %c0_116] : memref<64x128xf32, #tpu.memory_space<vmem>>, vector<8x128xf32>
    %cst_117 = arith.constant dense<0.000000e+00> : vector<8x256xf32>
    %335 = tpu.matmul %306, %39, %cst_117 {dimension_numbers = #tpu.dot_dimension_numbers<[1], [0], [0], [1], [0, 0, 1, 1], [], []>} : vector<8x32xf32>, vector<32x256xf32>, vector<8x256xf32> -> vector<8x256xf32>
    %336 = vector.extract_strided_slice %335 {offsets = [0, 0], sizes = [8, 128], strides = [1, 1]} : vector<8x256xf32> to vector<8x128xf32>
    %337 = vector.extract_strided_slice %335 {offsets = [0, 128], sizes = [8, 128], strides = [1, 1]} : vector<8x256xf32> to vector<8x128xf32>
    %338 = vector.shape_cast %43 : vector<8x1xi1> to vector<8x1xi1>
    %339 = vector.broadcast %338 : vector<8x1xi1> to vector<8x128xi1>
    %340 = arith.select %339, %336, %337 : vector<8x128xi1>, vector<8x128xf32>
    %341 = arith.addf %334, %340 : vector<8x128xf32>
    %342 = arith.negf %341 : vector<8x128xf32>
    %343 = math.exp %342 : vector<8x128xf32>
    %cst_118 = arith.constant 1.000000e+00 : f32
    %344 = vector.broadcast %cst_118 : f32 to vector<8x128xf32>
    %345 = arith.addf %344, %343 : vector<8x128xf32>
    %346 = arith.divf %344, %345 : vector<8x128xf32>
    %347 = vector.extract_strided_slice %346 {offsets = [0, 0], sizes = [8, 32], strides = [1, 1]} : vector<8x128xf32> to vector<8x32xf32>
    %348 = vector.extract_strided_slice %346 {offsets = [0, 32], sizes = [8, 32], strides = [1, 1]} : vector<8x128xf32> to vector<8x32xf32>
    %349 = vector.extract_strided_slice %346 {offsets = [0, 96], sizes = [8, 32], strides = [1, 1]} : vector<8x128xf32> to vector<8x32xf32>
    %350 = vector.extract_strided_slice %341 {offsets = [0, 64], sizes = [8, 32], strides = [1, 1]} : vector<8x128xf32> to vector<8x32xf32>
    %351 = math.tanh %350 : vector<8x32xf32>
    %352 = arith.mulf %348, %309 : vector<8x32xf32>
    %353 = arith.mulf %347, %351 : vector<8x32xf32>
    %354 = arith.addf %352, %353 : vector<8x32xf32>
    %355 = math.tanh %354 : vector<8x32xf32>
    %356 = arith.mulf %349, %355 : vector<8x32xf32>
    %357 = vector.broadcast %c5_i32 : i32 to vector<8x1xi32>
    %358 = vector.broadcast %330 : i32 to vector<8x1xi32>
    %359 = arith.select %43, %357, %358 : vector<8x1xi1>, vector<8x1xi32>
    %360 = arith.cmpi slt, %359, %40 : vector<8x1xi32>
    %361 = vector.shape_cast %360 : vector<8x1xi1> to vector<8x1xi1>
    %362 = vector.broadcast %361 : vector<8x1xi1> to vector<8x32xi1>
    %363 = arith.select %362, %356, %306 : vector<8x32xi1>, vector<8x32xf32>
    %364 = vector.shape_cast %360 : vector<8x1xi1> to vector<8x1xi1>
    %365 = vector.broadcast %364 : vector<8x1xi1> to vector<8x32xi1>
    %366 = arith.select %365, %354, %309 : vector<8x32xi1>, vector<8x32xf32>
    %367 = vector.extract_strided_slice %360 {offsets = [0, 0], sizes = [4, 1], strides = [1, 1]} : vector<8x1xi1> to vector<4x1xi1>
    %368 = vector.extract_strided_slice %356 {offsets = [0, 0], sizes = [4, 32], strides = [1, 1]} : vector<8x32xf32> to vector<4x32xf32>
    %cst_119 = arith.constant 0.000000e+00 : f32
    %369 = vector.shape_cast %367 : vector<4x1xi1> to vector<4x1xi1>
    %370 = vector.broadcast %369 : vector<4x1xi1> to vector<4x32xi1>
    %371 = vector.broadcast %cst_119 : f32 to vector<4x32xf32>
    %372 = arith.select %370, %368, %371 : vector<4x32xi1>, vector<4x32xf32>
    %373 = arith.index_cast %c5_i32 : i32 to index
    %c0_120 = arith.constant 0 : index
    %c0_121 = arith.constant 0 : index
    %374 = vector.load %arg6[%373, %c0_120, %c0_121] : memref<8x4x64xf32, #tpu.memory_space<vmem>>, vector<1x4x32xf32>
    %375 = vector.shape_cast %374 : vector<1x4x32xf32> to vector<4x32xf32>
    %376 = vector.shape_cast %372 : vector<4x32xf32> to vector<1x4x32xf32>
    tpu.vector_store %arg6[%373, %c0_120, %c0_121], %376 {strides = array<i32>} : memref<8x4x64xf32, #tpu.memory_space<vmem>>, vector<1x4x32xf32>,
    %377 = vector.extract_strided_slice %360 {offsets = [4, 0], sizes = [4, 1], strides = [1, 1]} : vector<8x1xi1> to vector<4x1xi1>
    %378 = vector.extract_strided_slice %356 {offsets = [4, 0], sizes = [4, 32], strides = [1, 1]} : vector<8x32xf32> to vector<4x32xf32>
    %cst_122 = arith.constant 0.000000e+00 : f32
    %379 = vector.shape_cast %377 : vector<4x1xi1> to vector<4x1xi1>
    %380 = vector.broadcast %379 : vector<4x1xi1> to vector<4x32xi1>
    %381 = vector.broadcast %cst_122 : f32 to vector<4x32xf32>
    %382 = arith.select %380, %378, %381 : vector<4x32xi1>, vector<4x32xf32>
    %383 = arith.index_cast %330 : i32 to index
    %c0_123 = arith.constant 0 : index
    %c32_124 = arith.constant 32 : index
    %384 = vector.load %arg6[%383, %c0_123, %c32_124] : memref<8x4x64xf32, #tpu.memory_space<vmem>>, vector<1x4x32xf32>
    %385 = vector.shape_cast %384 : vector<1x4x32xf32> to vector<4x32xf32>
    %386 = vector.shape_cast %382 : vector<4x32xf32> to vector<1x4x32xf32>
    tpu.vector_store %arg6[%383, %c0_123, %c32_124], %386 {strides = array<i32>} : memref<8x4x64xf32, #tpu.memory_space<vmem>>, vector<1x4x32xf32>,
    %c6_i32 = arith.constant 6 : i32
    %c7_i32_125 = arith.constant 7 : i32
    %387 = arith.subi %c7_i32_125, %c6_i32 : i32
    %c8_i32_126 = arith.constant 8 : i32
    %388 = arith.muli %c6_i32, %c8_i32_126 : i32
    %389 = tpu.assume_multiple %388, 8 : i32
    %390 = arith.index_cast %389 : i32 to index
    %c0_127 = arith.constant 0 : index
    %391 = vector.load %arg10[%390, %c0_127] : memref<64x128xf32, #tpu.memory_space<vmem>>, vector<8x128xf32>
    %cst_128 = arith.constant dense<0.000000e+00> : vector<8x256xf32>
    %392 = tpu.matmul %363, %39, %cst_128 {dimension_numbers = #tpu.dot_dimension_numbers<[1], [0], [0], [1], [0, 0, 1, 1], [], []>} : vector<8x32xf32>, vector<32x256xf32>, vector<8x256xf32> -> vector<8x256xf32>
    %393 = vector.extract_strided_slice %392 {offsets = [0, 0], sizes = [8, 128], strides = [1, 1]} : vector<8x256xf32> to vector<8x128xf32>
    %394 = vector.extract_strided_slice %392 {offsets = [0, 128], sizes = [8, 128], strides = [1, 1]} : vector<8x256xf32> to vector<8x128xf32>
    %395 = vector.shape_cast %43 : vector<8x1xi1> to vector<8x1xi1>
    %396 = vector.broadcast %395 : vector<8x1xi1> to vector<8x128xi1>
    %397 = arith.select %396, %393, %394 : vector<8x128xi1>, vector<8x128xf32>
    %398 = arith.addf %391, %397 : vector<8x128xf32>
    %399 = arith.negf %398 : vector<8x128xf32>
    %400 = math.exp %399 : vector<8x128xf32>
    %cst_129 = arith.constant 1.000000e+00 : f32
    %401 = vector.broadcast %cst_129 : f32 to vector<8x128xf32>
    %402 = arith.addf %401, %400 : vector<8x128xf32>
    %403 = arith.divf %401, %402 : vector<8x128xf32>
    %404 = vector.extract_strided_slice %403 {offsets = [0, 0], sizes = [8, 32], strides = [1, 1]} : vector<8x128xf32> to vector<8x32xf32>
    %405 = vector.extract_strided_slice %403 {offsets = [0, 32], sizes = [8, 32], strides = [1, 1]} : vector<8x128xf32> to vector<8x32xf32>
    %406 = vector.extract_strided_slice %403 {offsets = [0, 96], sizes = [8, 32], strides = [1, 1]} : vector<8x128xf32> to vector<8x32xf32>
    %407 = vector.extract_strided_slice %398 {offsets = [0, 64], sizes = [8, 32], strides = [1, 1]} : vector<8x128xf32> to vector<8x32xf32>
    %408 = math.tanh %407 : vector<8x32xf32>
    %409 = arith.mulf %405, %366 : vector<8x32xf32>
    %410 = arith.mulf %404, %408 : vector<8x32xf32>
    %411 = arith.addf %409, %410 : vector<8x32xf32>
    %412 = math.tanh %411 : vector<8x32xf32>
    %413 = arith.mulf %406, %412 : vector<8x32xf32>
    %414 = vector.broadcast %c6_i32 : i32 to vector<8x1xi32>
    %415 = vector.broadcast %387 : i32 to vector<8x1xi32>
    %416 = arith.select %43, %414, %415 : vector<8x1xi1>, vector<8x1xi32>
    %417 = arith.cmpi slt, %416, %40 : vector<8x1xi32>
    %418 = vector.shape_cast %417 : vector<8x1xi1> to vector<8x1xi1>
    %419 = vector.broadcast %418 : vector<8x1xi1> to vector<8x32xi1>
    %420 = arith.select %419, %413, %363 : vector<8x32xi1>, vector<8x32xf32>
    %421 = vector.shape_cast %417 : vector<8x1xi1> to vector<8x1xi1>
    %422 = vector.broadcast %421 : vector<8x1xi1> to vector<8x32xi1>
    %423 = arith.select %422, %411, %366 : vector<8x32xi1>, vector<8x32xf32>
    %424 = vector.extract_strided_slice %417 {offsets = [0, 0], sizes = [4, 1], strides = [1, 1]} : vector<8x1xi1> to vector<4x1xi1>
    %425 = vector.extract_strided_slice %413 {offsets = [0, 0], sizes = [4, 32], strides = [1, 1]} : vector<8x32xf32> to vector<4x32xf32>
    %cst_130 = arith.constant 0.000000e+00 : f32
    %426 = vector.shape_cast %424 : vector<4x1xi1> to vector<4x1xi1>
    %427 = vector.broadcast %426 : vector<4x1xi1> to vector<4x32xi1>
    %428 = vector.broadcast %cst_130 : f32 to vector<4x32xf32>
    %429 = arith.select %427, %425, %428 : vector<4x32xi1>, vector<4x32xf32>
    %430 = arith.index_cast %c6_i32 : i32 to index
    %c0_131 = arith.constant 0 : index
    %c0_132 = arith.constant 0 : index
    %431 = vector.load %arg6[%430, %c0_131, %c0_132] : memref<8x4x64xf32, #tpu.memory_space<vmem>>, vector<1x4x32xf32>
    %432 = vector.shape_cast %431 : vector<1x4x32xf32> to vector<4x32xf32>
    %433 = vector.shape_cast %429 : vector<4x32xf32> to vector<1x4x32xf32>
    tpu.vector_store %arg6[%430, %c0_131, %c0_132], %433 {strides = array<i32>} : memref<8x4x64xf32, #tpu.memory_space<vmem>>, vector<1x4x32xf32>,
    %434 = vector.extract_strided_slice %417 {offsets = [4, 0], sizes = [4, 1], strides = [1, 1]} : vector<8x1xi1> to vector<4x1xi1>
    %435 = vector.extract_strided_slice %413 {offsets = [4, 0], sizes = [4, 32], strides = [1, 1]} : vector<8x32xf32> to vector<4x32xf32>
    %cst_133 = arith.constant 0.000000e+00 : f32
    %436 = vector.shape_cast %434 : vector<4x1xi1> to vector<4x1xi1>
    %437 = vector.broadcast %436 : vector<4x1xi1> to vector<4x32xi1>
    %438 = vector.broadcast %cst_133 : f32 to vector<4x32xf32>
    %439 = arith.select %437, %435, %438 : vector<4x32xi1>, vector<4x32xf32>
    %440 = arith.index_cast %387 : i32 to index
    %c0_134 = arith.constant 0 : index
    %c32_135 = arith.constant 32 : index
    %441 = vector.load %arg6[%440, %c0_134, %c32_135] : memref<8x4x64xf32, #tpu.memory_space<vmem>>, vector<1x4x32xf32>
    %442 = vector.shape_cast %441 : vector<1x4x32xf32> to vector<4x32xf32>
    %443 = vector.shape_cast %439 : vector<4x32xf32> to vector<1x4x32xf32>
    tpu.vector_store %arg6[%440, %c0_134, %c32_135], %443 {strides = array<i32>} : memref<8x4x64xf32, #tpu.memory_space<vmem>>, vector<1x4x32xf32>,
    %c7_i32_136 = arith.constant 7 : i32
    %c7_i32_137 = arith.constant 7 : i32
    %444 = arith.subi %c7_i32_137, %c7_i32_136 : i32
    %c8_i32_138 = arith.constant 8 : i32
    %445 = arith.muli %c7_i32_136, %c8_i32_138 : i32
    %446 = tpu.assume_multiple %445, 8 : i32
    %447 = arith.index_cast %446 : i32 to index
    %c0_139 = arith.constant 0 : index
    %448 = vector.load %arg10[%447, %c0_139] : memref<64x128xf32, #tpu.memory_space<vmem>>, vector<8x128xf32>
    %cst_140 = arith.constant dense<0.000000e+00> : vector<8x256xf32>
    %449 = tpu.matmul %420, %39, %cst_140 {dimension_numbers = #tpu.dot_dimension_numbers<[1], [0], [0], [1], [0, 0, 1, 1], [], []>} : vector<8x32xf32>, vector<32x256xf32>, vector<8x256xf32> -> vector<8x256xf32>
    %450 = vector.extract_strided_slice %449 {offsets = [0, 0], sizes = [8, 128], strides = [1, 1]} : vector<8x256xf32> to vector<8x128xf32>
    %451 = vector.extract_strided_slice %449 {offsets = [0, 128], sizes = [8, 128], strides = [1, 1]} : vector<8x256xf32> to vector<8x128xf32>
    %452 = vector.shape_cast %43 : vector<8x1xi1> to vector<8x1xi1>
    %453 = vector.broadcast %452 : vector<8x1xi1> to vector<8x128xi1>
    %454 = arith.select %453, %450, %451 : vector<8x128xi1>, vector<8x128xf32>
    %455 = arith.addf %448, %454 : vector<8x128xf32>
    %456 = arith.negf %455 : vector<8x128xf32>
    %457 = math.exp %456 : vector<8x128xf32>
    %cst_141 = arith.constant 1.000000e+00 : f32
    %458 = vector.broadcast %cst_141 : f32 to vector<8x128xf32>
    %459 = arith.addf %458, %457 : vector<8x128xf32>
    %460 = arith.divf %458, %459 : vector<8x128xf32>
    %461 = vector.extract_strided_slice %460 {offsets = [0, 0], sizes = [8, 32], strides = [1, 1]} : vector<8x128xf32> to vector<8x32xf32>
    %462 = vector.extract_strided_slice %460 {offsets = [0, 32], sizes = [8, 32], strides = [1, 1]} : vector<8x128xf32> to vector<8x32xf32>
    %463 = vector.extract_strided_slice %460 {offsets = [0, 96], sizes = [8, 32], strides = [1, 1]} : vector<8x128xf32> to vector<8x32xf32>
    %464 = vector.extract_strided_slice %455 {offsets = [0, 64], sizes = [8, 32], strides = [1, 1]} : vector<8x128xf32> to vector<8x32xf32>
    %465 = math.tanh %464 : vector<8x32xf32>
    %466 = arith.mulf %462, %423 : vector<8x32xf32>
    %467 = arith.mulf %461, %465 : vector<8x32xf32>
    %468 = arith.addf %466, %467 : vector<8x32xf32>
    %469 = math.tanh %468 : vector<8x32xf32>
    %470 = arith.mulf %463, %469 : vector<8x32xf32>
    %471 = vector.broadcast %c7_i32_136 : i32 to vector<8x1xi32>
    %472 = vector.broadcast %444 : i32 to vector<8x1xi32>
    %473 = arith.select %43, %471, %472 : vector<8x1xi1>, vector<8x1xi32>
    %474 = arith.cmpi slt, %473, %40 : vector<8x1xi32>
    %475 = vector.shape_cast %474 : vector<8x1xi1> to vector<8x1xi1>
    %476 = vector.broadcast %475 : vector<8x1xi1> to vector<8x32xi1>
    %477 = arith.select %476, %470, %420 : vector<8x32xi1>, vector<8x32xf32>
    %478 = vector.shape_cast %474 : vector<8x1xi1> to vector<8x1xi1>
    %479 = vector.broadcast %478 : vector<8x1xi1> to vector<8x32xi1>
    %480 = arith.select %479, %468, %423 : vector<8x32xi1>, vector<8x32xf32>
    %481 = vector.extract_strided_slice %474 {offsets = [0, 0], sizes = [4, 1], strides = [1, 1]} : vector<8x1xi1> to vector<4x1xi1>
    %482 = vector.extract_strided_slice %470 {offsets = [0, 0], sizes = [4, 32], strides = [1, 1]} : vector<8x32xf32> to vector<4x32xf32>
    %cst_142 = arith.constant 0.000000e+00 : f32
    %483 = vector.shape_cast %481 : vector<4x1xi1> to vector<4x1xi1>
    %484 = vector.broadcast %483 : vector<4x1xi1> to vector<4x32xi1>
    %485 = vector.broadcast %cst_142 : f32 to vector<4x32xf32>
    %486 = arith.select %484, %482, %485 : vector<4x32xi1>, vector<4x32xf32>
    %487 = arith.index_cast %c7_i32_136 : i32 to index
    %c0_143 = arith.constant 0 : index
    %c0_144 = arith.constant 0 : index
    %488 = vector.load %arg6[%487, %c0_143, %c0_144] : memref<8x4x64xf32, #tpu.memory_space<vmem>>, vector<1x4x32xf32>
    %489 = vector.shape_cast %488 : vector<1x4x32xf32> to vector<4x32xf32>
    %490 = vector.shape_cast %486 : vector<4x32xf32> to vector<1x4x32xf32>
    tpu.vector_store %arg6[%487, %c0_143, %c0_144], %490 {strides = array<i32>} : memref<8x4x64xf32, #tpu.memory_space<vmem>>, vector<1x4x32xf32>,
    %491 = vector.extract_strided_slice %474 {offsets = [4, 0], sizes = [4, 1], strides = [1, 1]} : vector<8x1xi1> to vector<4x1xi1>
    %492 = vector.extract_strided_slice %470 {offsets = [4, 0], sizes = [4, 32], strides = [1, 1]} : vector<8x32xf32> to vector<4x32xf32>
    %cst_145 = arith.constant 0.000000e+00 : f32
    %493 = vector.shape_cast %491 : vector<4x1xi1> to vector<4x1xi1>
    %494 = vector.broadcast %493 : vector<4x1xi1> to vector<4x32xi1>
    %495 = vector.broadcast %cst_145 : f32 to vector<4x32xf32>
    %496 = arith.select %494, %492, %495 : vector<4x32xi1>, vector<4x32xf32>
    %497 = arith.index_cast %444 : i32 to index
    %c0_146 = arith.constant 0 : index
    %c32_147 = arith.constant 32 : index
    %498 = vector.load %arg6[%497, %c0_146, %c32_147] : memref<8x4x64xf32, #tpu.memory_space<vmem>>, vector<1x4x32xf32>
    %499 = vector.shape_cast %498 : vector<1x4x32xf32> to vector<4x32xf32>
    %500 = vector.shape_cast %496 : vector<4x32xf32> to vector<1x4x32xf32>
    tpu.vector_store %arg6[%497, %c0_146, %c32_147], %500 {strides = array<i32>} : memref<8x4x64xf32, #tpu.memory_space<vmem>>, vector<1x4x32xf32>,
    %c8_i32_148 = arith.constant 8 : i32
    %c0_149 = arith.constant 0 : index
    %c0_150 = arith.constant 0 : index
    %501 = vector.load %arg7[%c0_149, %c0_150] : memref<8x32xf32, #tpu.memory_space<vmem>>, vector<8x32xf32>
    tpu.vector_store %arg7[%c0_149, %c0_150], %477 {strides = array<i32>} : memref<8x32xf32, #tpu.memory_space<vmem>>, vector<8x32xf32>,
    %c0_151 = arith.constant 0 : index
    %c0_152 = arith.constant 0 : index
    %502 = vector.load %arg8[%c0_151, %c0_152] : memref<8x32xf32, #tpu.memory_space<vmem>>, vector<8x32xf32>
    tpu.vector_store %arg8[%c0_151, %c0_152], %480 {strides = array<i32>} : memref<8x32xf32, #tpu.memory_space<vmem>>, vector<8x32xf32>,
    return
  }
  func.func @transform_0(%arg0: i32) -> (i32, i32) {
    %c0_i32 = arith.constant 0 : i32
    %c0_i32_0 = arith.constant 0 : i32
    %c0_i32_1 = arith.constant 0 : i32
    return %c0_i32, %c0_i32_0 : i32, i32
  }
  func.func @transform_1(%arg0: i32) -> (i32, i32) {
    %c0_i32 = arith.constant 0 : i32
    %c0_i32_0 = arith.constant 0 : i32
    %c0_i32_1 = arith.constant 0 : i32
    return %c0_i32, %c0_i32_0 : i32, i32
  }
  func.func @transform_2(%arg0: i32) -> (i32, i32) {
    %c0_i32 = arith.constant 0 : i32
    %c0_i32_0 = arith.constant 0 : i32
    %c0_i32_1 = arith.constant 0 : i32
    return %c0_i32, %c0_i32_0 : i32, i32
  }
  func.func @transform_3(%arg0: i32) -> (i32, i32) {
    %c0_i32 = arith.constant 0 : i32
    %c0_i32_0 = arith.constant 0 : i32
    %c0_i32_1 = arith.constant 0 : i32
    return %c0_i32, %c0_i32_0 : i32, i32
  }
  func.func @transform_4(%arg0: i32) -> (i32, i32) {
    %c0_i32 = arith.constant 0 : i32
    %c0_i32_0 = arith.constant 0 : i32
    %c0_i32_1 = arith.constant 0 : i32
    return %c0_i32, %c0_i32_0 : i32, i32
  }
  func.func @transform_5(%arg0: i32) -> (i32, i32, i32) {
    %c0_i32 = arith.constant 0 : i32
    %c0_i32_0 = arith.constant 0 : i32
    %c0_i32_1 = arith.constant 0 : i32
    %c0_i32_2 = arith.constant 0 : i32
    return %c0_i32, %c0_i32_0, %c0_i32_1 : i32, i32, i32
  }
  func.func @transform_6(%arg0: i32) -> (i32, i32) {
    %c0_i32 = arith.constant 0 : i32
    %c0_i32_0 = arith.constant 0 : i32
    %c0_i32_1 = arith.constant 0 : i32
    return %c0_i32, %c0_i32_0 : i32, i32
  }
  func.func @transform_7(%arg0: i32) -> (i32, i32) {
    %c0_i32 = arith.constant 0 : i32
    %c0_i32_0 = arith.constant 0 : i32
    %c0_i32_1 = arith.constant 0 : i32
    return %c0_i32, %c0_i32_0 : i32, i32
  }
}

</mosaic_0001>

<llo_original>
// kernel: tpu_custom_call.1
$region0: #{tpu_custom_call.1}
  #allocation0 [shape = 'u32[]', space=smem, size = 0x4, offset = 0x4, fixed_abs, tag = 'smem constant byte address 0x4 - core index']
  #allocation1 [shape = 'u32[72,128]{1,0:T(1,128)}', space=vmem, size = 0x9000, scoped, tag = 'internal scratch']
  #allocation2 [shape = 'f32[32,256]{1,0:T(8,128)}', space=vmem, size = 0x8000, scoped, tag = 'scratch operand']
  #allocation3 [shape = 'f32[64,128]{1,0:T(8,128)}', space=vmem, size = 0x8000, scoped, tag = 'scratch operand']
  %s0 = inlined_call_operand.hbm [shape: f32[32,32], index: 0, kind: input, shape index: {}]
  %s1 = inlined_call_operand.hbm [shape: f32[32,256], index: 1, kind: input, shape index: {}]
  %s2 = inlined_call_operand.vmem [shape: f32[1,256], index: 2, kind: input, shape index: {}]
  %s3 = inlined_call_operand.hbm [shape: f32[32,256], index: 3, kind: input, shape index: {}]
  %s4 = inlined_call_operand.vmem [shape: s32[8,1], index: 4, kind: input, shape index: {}]
  %s5 = inlined_call_operand.hbm [shape: f32[8,4,64], index: 5, kind: output, shape index: {0}]
  %s6 = inlined_call_operand.hbm [shape: f32[8,32], index: 6, kind: output, shape index: {1}]
  %s7 = inlined_call_operand.hbm [shape: f32[8,32], index: 7, kind: output, shape index: {2}]
  %8 = xla_tuple %s5, %s6, %s7
  %s9 = sld [smem:[#allocation0]]
  $region58: #{tpu_custom_call.1} parent=0
    _
  %s11 = ssub.s32 1, %s9
  %s12 = scalar_select 0, %s11, %s9
  $region1: #{tpu_custom_call.1} parent=0
    #allocation4 [shape = 'u8[16384]{0}', space=vmem, size = 0x4000, scoped, tag = 'input window, operand 0, single buffered']
    #allocation5 [shape = 's32[1]{0}', space=sflag, size = 0x4, scoped, tag = 'scoped memory for tpu_custom_call.1']
    #allocation6 [shape = 's32[1]{0}', space=sflag, size = 0x4, scoped, tag = 'scoped memory for tpu_custom_call.1']
    #allocation7 [shape = 'u8[32768]{0}', space=vmem, size = 0x8000, scoped, tag = 'input window, operand 1, single buffered']
    #allocation8 [shape = 's32[1]{0}', space=sflag, size = 0x4, scoped, tag = 'scoped memory for tpu_custom_call.1']
    #allocation9 [shape = 'u8[32768]{0}', space=vmem, size = 0x8000, scoped, tag = 'input window, operand 3, single buffered']
    #allocation10 [shape = 'u8[16384]{0}', space=vmem, size = 0x4000, scoped, tag = 'output window, operand 0, single buffered']
    #allocation11 [shape = 'u8[4096]{0}', space=vmem, size = 0x1000, scoped, tag = 'output window, operand 1, single buffered']
    #allocation12 [shape = 's32[1]{0}', space=sflag, size = 0x4, scoped, tag = 'scoped memory for tpu_custom_call.1']
    #allocation13 [shape = 'u8[4096]{0}', space=vmem, size = 0x1000, scoped, tag = 'output window, operand 2, single buffered']
    %13 = vsyncpa [#allocation5], 0
    %14 = vsyncpa [#allocation8], 0
    %15 = vsyncpa [#allocation6], 0
    %16 = vsyncpa [#allocation12], 0
    // Predicated region
    $region2: #{tpu_custom_call.1} parent=1 // pred_check
      _
    $region3: #{tpu_custom_call.1} parent=1 // pred_check_branch
      %18 = sbr.rel (0) target = $region5
    $region4: #{tpu_custom_call.1} parent=1 // pred_region
      %20 = vsyncadd [#allocation5], 0
      %s21 = sshll.u32 %s0, 4
      %s22 = int_to_ptr.hbm [resolvable:$true] %s21
      %s23 = sshll.u32 [#allocation4], 4
      %s24 = int_to_ptr.vmem [resolvable:$true] %s23
      %29 = dma.hbm_to_vmem [thread:$0]  %s22, 512, %s24, [#allocation5], 128, 128, 8
    $region5: #{tpu_custom_call.1} parent=1 // pred_fallthru
      _
    // Predicated region
    $region6: #{tpu_custom_call.1} parent=1 // pred_check
      _
    $region7: #{tpu_custom_call.1} parent=1 // pred_check_branch
      %31 = sbr.rel (0) target = $region9
    $region8: #{tpu_custom_call.1} parent=1 // pred_region
      %33 = vsyncadd [#allocation8], 0
      %s34 = sshll.u32 %s1, 4
      %s35 = int_to_ptr.hbm [resolvable:$true] %s34
      %s36 = sshll.u32 [#allocation7], 4
      %s37 = int_to_ptr.vmem [resolvable:$true] %s36
      %42 = dma.hbm_to_vmem [thread:$0]  %s35, 1024, %s37, [#allocation8], 256, 256, 16
    $region9: #{tpu_custom_call.1} parent=1 // pred_fallthru
      _
    // Predicated region
    $region10: #{tpu_custom_call.1} parent=1 // pred_check
      _
    $region11: #{tpu_custom_call.1} parent=1 // pred_check_branch
      %44 = sbr.rel (0) target = $region13
    $region12: #{tpu_custom_call.1} parent=1 // pred_region
      _
    $region13: #{tpu_custom_call.1} parent=1 // pred_fallthru
      _
    // Predicated region
    $region14: #{tpu_custom_call.1} parent=1 // pred_check
      _
    $region15: #{tpu_custom_call.1} parent=1 // pred_check_branch
      %46 = sbr.rel (0) target = $region17
    $region16: #{tpu_custom_call.1} parent=1 // pred_region
      %48 = vsyncadd [#allocation8], 0
      %s49 = sshll.u32 %s3, 4
      %s50 = int_to_ptr.hbm [resolvable:$true] %s49
      %s51 = sshll.u32 [#allocation9], 4
      %s52 = int_to_ptr.vmem [resolvable:$true] %s51
      %57 = dma.hbm_to_vmem [thread:$0]  %s50, 1024, %s52, [#allocation8], 256, 256, 16
    $region17: #{tpu_custom_call.1} parent=1 // pred_fallthru
      _
    // Predicated region
    $region18: #{tpu_custom_call.1} parent=1 // pred_check
      _
    $region19: #{tpu_custom_call.1} parent=1 // pred_check_branch
      %59 = sbr.rel (0) target = $region21
    $region20: #{tpu_custom_call.1} parent=1 // pred_region
      _
    $region21: #{tpu_custom_call.1} parent=1 // pred_fallthru
      _
    // Predicated region
    $region22: #{tpu_custom_call.1} parent=1 // pred_check
      _
    $region23: #{tpu_custom_call.1} parent=1 // pred_check_branch
      %61 = sbr.rel (0) target = $region25
    $region24: #{tpu_custom_call.1} parent=1 // pred_region
      %63 = dma.done [#allocation5], 512
    $region25: #{tpu_custom_call.1} parent=1 // pred_fallthru
      _
    // Predicated region
    $region26: #{tpu_custom_call.1} parent=1 // pred_check
      _
    $region27: #{tpu_custom_call.1} parent=1 // pred_check_branch
      %65 = sbr.rel (0) target = $region29
    $region28: #{tpu_custom_call.1} parent=1 // pred_region
      %67 = dma.done [#allocation8], 1024
    $region29: #{tpu_custom_call.1} parent=1 // pred_fallthru
      _
    // Predicated region
    $region30: #{tpu_custom_call.1} parent=1 // pred_check
      _
    $region31: #{tpu_custom_call.1} parent=1 // pred_check_branch
      %69 = sbr.rel (0) target = $region33
    $region32: #{tpu_custom_call.1} parent=1 // pred_region
      %71 = dma.done [#allocation8], 1024
    $region33: #{tpu_custom_call.1} parent=1 // pred_fallthru
      _
    %v72 = vld [vmem:[#allocation4] sm:$0xff]
    %v73 = vld [vmem:[#allocation4 + $0x8] sm:$0xff]
    %v74 = vld [vmem:[#allocation4 + $0x10] sm:$0xff]
    %v75 = vld [vmem:[#allocation4 + $0x18] sm:$0xff]
    %v76 = vld [vmem:[#allocation7] sm:$0xff]
    %v77 = vld [vmem:[#allocation7 + $0x8] sm:$0xff]
    %v78 = vld [vmem:[#allocation7 + $0x10] sm:$0xff]
    %v79 = vld [vmem:[#allocation7 + $0x18] sm:$0xff]
    %v80 = vld [vmem:[#allocation7 + $0x20] sm:$0xff]
    %v81 = vld [vmem:[#allocation7 + $0x28] sm:$0xff]
    %v82 = vld [vmem:[#allocation7 + $0x30] sm:$0xff]
    %v83 = vld [vmem:[#allocation7 + $0x38] sm:$0xff]
    %v84 = vld [vmem:[%s2] sm:$0x3]
    %v86 = vperm.slane %v84, 0
    %v87 = vperm.slane %v84, 1
    %vm90 = vcmask 261120
    %v92 = vsel %vm90, %v72, 0
    %v95 = vsel %vm90, %v73, 0
    %v98 = vsel %vm90, %v74, 0
    %v101 = vsel %vm90, %v75, 0
    %103 = vmatpush.msra.mxu0 0.0
    %104 = vmatpush.msra.mxu0 0.0
    %105 = vmatpush.msra.mxu0 0.0
    %106 = vmatpush.msra.mxu0 0.0
    %107 = vmatpush.msra.mxu0 0.0
    %108 = vmatpush.msra.mxu0 0.0
    %109 = vmatpush.msra.mxu0 0.0
    %110 = vmatpush.msra.mxu0 0.0
    %111 = vmatpush.msra.mxu0 0.0
    %112 = vmatpush.msra.mxu0 0.0
    %113 = vmatpush.msra.mxu0 0.0
    %114 = vmatpush.msra.mxu0 0.0
    %115 = vmatpush.msra.mxu0 %v82
    %116 = vmatpush.msra.mxu0 %v80
    %117 = vmatpush.msra.mxu0 %v78
    %118 = vmatpush.msra.mxu0 %v76
    %119 = vmatmul.f32.gmra.mxu0 %v92
    %v120 = vpop.f32.mrf.mxu0
    %v121 = vadd.f32 %v86, %v120
    %122 = vmatmul.f32.gmra.mxu0 %v95
    %v123 = vpop.f32.mrf.mxu0
    %v124 = vadd.f32 %v86, %v123
    %125 = vmatmul.f32.gmra.mxu0 %v98
    %v126 = vpop.f32.mrf.mxu0
    %v127 = vadd.f32 %v86, %v126
    %128 = vmatmul.f32.gmra.mxu0 %v101
    %v129 = vpop.f32.mrf.mxu0
    %v130 = vadd.f32 %v86, %v129
    %131 = vdwg.mxu0
    %132 = vmatpush.msra.mxu0 0.0
    %133 = vmatpush.msra.mxu0 0.0
    %134 = vmatpush.msra.mxu0 0.0
    %135 = vmatpush.msra.mxu0 0.0
    %136 = vmatpush.msra.mxu0 0.0
    %137 = vmatpush.msra.mxu0 0.0
    %138 = vmatpush.msra.mxu0 0.0
    %139 = vmatpush.msra.mxu0 0.0
    %140 = vmatpush.msra.mxu0 0.0
    %141 = vmatpush.msra.mxu0 0.0
    %142 = vmatpush.msra.mxu0 0.0
    %143 = vmatpush.msra.mxu0 0.0
    %144 = vmatpush.msra.mxu0 %v83
    %145 = vmatpush.msra.mxu0 %v81
    %146 = vmatpush.msra.mxu0 %v79
    %147 = vmatpush.msra.mxu0 %v77
    %148 = vmatmul.f32.gmra.mxu0 %v92
    %v149 = vpop.f32.mrf.mxu0
    %v150 = vadd.f32 %v87, %v149
    %151 = vmatmul.f32.gmra.mxu0 %v95
    %v152 = vpop.f32.mrf.mxu0
    %v153 = vadd.f32 %v87, %v152
    %154 = vmatmul.f32.gmra.mxu0 %v98
    %v155 = vpop.f32.mrf.mxu0
    %v156 = vadd.f32 %v87, %v155
    %157 = vmatmul.f32.gmra.mxu0 %v101
    %v158 = vpop.f32.mrf.mxu0
    %v159 = vadd.f32 %v87, %v158
    %160 = vdwg.mxu0
    %161 = vst [vmem:[#allocation2] sm:$0xff] %v121
    %162 = vst [vmem:[#allocation2 + $0x8] sm:$0xff] %v150
    %163 = vst [vmem:[#allocation2 + $0x10] sm:$0xff] %v124
    %164 = vst [vmem:[#allocation2 + $0x18] sm:$0xff] %v153
    %165 = vst [vmem:[#allocation2 + $0x20] sm:$0xff] %v127
    %166 = vst [vmem:[#allocation2 + $0x28] sm:$0xff] %v156
    %167 = vst [vmem:[#allocation2 + $0x30] sm:$0xff] %v130
    %168 = vst [vmem:[#allocation2 + $0x38] sm:$0xff] %v159
    %v169 = vld [vmem:[#allocation2] sm:$0xf]
    %170 = vst [vmem:[#allocation3] sm:$0xf] %v169
    %v171 = vld [vmem:[#allocation2 + $0x38] sm:$0xf0]
    %172 = vst [vmem:[#allocation3] sm:$0xf0] %v171
    %v173 = vld [vmem:[#allocation2] sm:$0xf0]
    %174 = vst [vmem:[#allocation3 + $0x4] sm:$0xf0] %v173
    %v175 = vld [vmem:[#allocation2 + $0x38] sm:$0xf]
    %176 = vst [vmem:[#allocation3 + $0xc] sm:$0xf] %v175
    %v177 = vld [vmem:[#allocation2 + $0x10] sm:$0xf]
    %178 = vst [vmem:[#allocation3 + $0x10] sm:$0xf] %v177
    %v179 = vld [vmem:[#allocation2 + $0x28] sm:$0xf0]
    %180 = vst [vmem:[#allocation3 + $0x10] sm:$0xf0] %v179
    %v181 = vld [vmem:[#allocation2 + $0x10] sm:$0xf0]
    %182 = vst [vmem:[#allocation3 + $0x14] sm:$0xf0] %v181
    %v183 = vld [vmem:[#allocation2 + $0x28] sm:$0xf]
    %184 = vst [vmem:[#allocation3 + $0x1c] sm:$0xf] %v183
    %v185 = vld [vmem:[#allocation2 + $0x20] sm:$0xf]
    %186 = vst [vmem:[#allocation3 + $0x20] sm:$0xf] %v185
    %v187 = vld [vmem:[#allocation2 + $0x18] sm:$0xf0]
    %188 = vst [vmem:[#allocation3 + $0x20] sm:$0xf0] %v187
    %v189 = vld [vmem:[#allocation2 + $0x20] sm:$0xf0]
    %190 = vst [vmem:[#allocation3 + $0x24] sm:$0xf0] %v189
    %v191 = vld [vmem:[#allocation2 + $0x18] sm:$0xf]
    %192 = vst [vmem:[#allocation3 + $0x2c] sm:$0xf] %v191
    %v193 = vld [vmem:[#allocation2 + $0x30] sm:$0xf]
    %194 = vst [vmem:[#allocation3 + $0x30] sm:$0xf] %v193
    %v195 = vld [vmem:[#allocation2 + $0x8] sm:$0xf0]
    %196 = vst [vmem:[#allocation3 + $0x30] sm:$0xf0] %v195
    %v197 = vld [vmem:[#allocation2 + $0x30] sm:$0xf0]
    %198 = vst [vmem:[#allocation3 + $0x34] sm:$0xf0] %v197
    %v199 = vld [vmem:[#allocation2 + $0x8] sm:$0xf]
    %200 = vst [vmem:[#allocation3 + $0x3c] sm:$0xf] %v199
    %v201 = vld [vmem:[#allocation9] sm:$0xff]
    %v202 = vld [vmem:[#allocation9 + $0x8] sm:$0xff]
    %v203 = vld [vmem:[#allocation9 + $0x10] sm:$0xff]
    %v204 = vld [vmem:[#allocation9 + $0x18] sm:$0xff]
    %v205 = vld [vmem:[#allocation9 + $0x20] sm:$0xff]
    %v206 = vld [vmem:[#allocation9 + $0x28] sm:$0xff]
    %v207 = vld [vmem:[#allocation9 + $0x30] sm:$0xff]
    %v208 = vld [vmem:[#allocation9 + $0x38] sm:$0xff]
    %v209 = vld [vmem:[%s4] sm:$0xff]
    %v210 = vlaneseq
    %v211 = vshrl.u32 %v210, 7
    %vm212 = vcmp.lt.s32.totalorder %v211, 4
    %v213 = vld [vmem:[#allocation3] sm:$0xff]
    %v215 = vsel %vm90, 0.0, 0
    %217 = vmatpush.msra.mxu0 0.0
    %218 = vmatpush.msra.mxu0 0.0
    %219 = vmatpush.msra.mxu0 0.0
    %220 = vmatpush.msra.mxu0 0.0
    %221 = vmatpush.msra.mxu0 0.0
    %222 = vmatpush.msra.mxu0 0.0
    %223 = vmatpush.msra.mxu0 0.0
    %224 = vmatpush.msra.mxu0 0.0
    %225 = vmatpush.msra.mxu0 0.0
    %226 = vmatpush.msra.mxu0 0.0
    %227 = vmatpush.msra.mxu0 0.0
    %228 = vmatpush.msra.mxu0 0.0
    %229 = vmatpush.msra.mxu0 %v207
    %230 = vmatpush.msra.mxu0 %v205
    %231 = vmatpush.msra.mxu0 %v203
    %232 = vmatpush.msra.mxu0 %v201
    %233 = vmatmul.f32.gmra.mxu0 %v215
    %v234 = vpop.f32.mrf.mxu0
    %v235 = vadd.f32 0.0, %v234
    %236 = vdwg.mxu0
    %237 = vmatpush.msra.mxu0 0.0
    %238 = vmatpush.msra.mxu0 0.0
    %239 = vmatpush.msra.mxu0 0.0
    %240 = vmatpush.msra.mxu0 0.0
    %241 = vmatpush.msra.mxu0 0.0
    %242 = vmatpush.msra.mxu0 0.0
    %243 = vmatpush.msra.mxu0 0.0
    %244 = vmatpush.msra.mxu0 0.0
    %245 = vmatpush.msra.mxu0 0.0
    %246 = vmatpush.msra.mxu0 0.0
    %247 = vmatpush.msra.mxu0 0.0
    %248 = vmatpush.msra.mxu0 0.0
    %249 = vmatpush.msra.mxu0 %v208
    %250 = vmatpush.msra.mxu0 %v206
    %251 = vmatpush.msra.mxu0 %v204
    %252 = vmatpush.msra.mxu0 %v202
    %253 = vmatmul.f32.gmra.mxu0 %v215
    %v254 = vpop.f32.mrf.mxu0
    %v255 = vadd.f32 0.0, %v254
    %256 = vdwg.mxu0
    %v257 = vsel %vm212, 1, 0
    %vm258 = vcmp.eq.s32.totalorder %v257, 1
    %v259 = vsel %vm258, %v235, %v255
    %v260 = vadd.f32 %v213, %v259
    %v261 = vxor.u32 %v260, 2147483648
    %v262 = vmul.f32 %v261, 1.442695
    %v263 = vpow.pop %v262
    %v264 = vadd.f32 %v263, 1.0
    %v265 = vrcp.pop %v264
    %v266 = vmul.f32 %v264, %v265
    %v267 = vsub.f32 1.0, %v266
    %v268 = vmul.f32 %v265, %v267
    %v269 = vadd.f32 %v265, %v268
    %vm270 = vweird.f32 %v264
    %vm271 = vweird.f32 %v265
    %vm272 = vmor %vm270, %vm271
    %v273 = vsel %vm272, %v265, %v269
    %v274 = vand.u32 2147483647, %v264
    %vm275 = vcmp.eq.f32.partialorder %v274, 8.507059e+37
    %v276 = vand.u32 %v264, 2147483648
    %v277 = vor.u32 1.1754944e-38, %v276
    %v278 = vsel %vm275, %v277, %v273
    %v279 = vmul.f32 1.0, %v278
    %v280 = vtanh.pop %v260
    %v281 = vmul.f32 %v279, 0.0
    %283 = vrot.lane.b32.xlu0 %v280, 64
    %v284 = vpop.permute.xlu0 %283
    %v286 = vmul.f32 %v279, %v284
    %288 = vrot.lane.b32.xlu0 %v286, 32
    %v289 = vpop.permute.xlu0 %288
    %v291 = vadd.f32 %v281, %v289
    %v292 = vtanh.pop %v291
    %294 = vrot.lane.b32.xlu0 %v292, 64
    %v295 = vpop.permute.xlu0 %294
    %v297 = vmul.f32 %v279, %v295
    %v298 = vsel %vm212, 0, 7
    %vm299 = vcmp.lt.s32.totalorder %v298, %v209
    %v300 = vsel %vm299, 1, 0
    %301 = vset.pattern.permute.xlu0 0
    %302 = vperm.xlu0 %301, %v300
    %v303 = vpop.permute.xlu0 %302
    %vm304 = vcmp.eq.s32.totalorder %v303, 1
    %v305 = vsel %vm304, %v297, 0.0
    %v306 = vsel %vm304, %v291, 0.0
    %308 = vrot.lane.b32.xlu0 %v305, 32
    %v309 = vpop.permute.xlu0 %308
    %vm311 = vcmask 257024
    %312 = vst.msk [vmem:[#allocation10] sm:$0xf] %vm311, %v309
    %313 = vrot.lane.b32.xlu0 %v305, 64
    %v314 = vpop.permute.xlu0 %313
    %s316 = scalar_lea.vmem [#allocation10], 28
    %vm317 = vcmask 523524
    %318 = vst.msk [vmem:[%s316 - $0x4] sm:$0xf0] %vm317, %v314
    %s319 = scalar_lea.vmem [#allocation3], 8
    %v320 = vld [vmem:[%s319] sm:$0xff]
    %v321 = vsel %vm90, %v309, 0
    %323 = vmatpush.msra.mxu0 0.0
    %324 = vmatpush.msra.mxu0 0.0
    %325 = vmatpush.msra.mxu0 0.0
    %326 = vmatpush.msra.mxu0 0.0
    %327 = vmatpush.msra.mxu0 0.0
    %328 = vmatpush.msra.mxu0 0.0
    %329 = vmatpush.msra.mxu0 0.0
    %330 = vmatpush.msra.mxu0 0.0
    %331 = vmatpush.msra.mxu0 0.0
    %332 = vmatpush.msra.mxu0 0.0
    %333 = vmatpush.msra.mxu0 0.0
    %334 = vmatpush.msra.mxu0 0.0
    %335 = vmatpush.msra.mxu0 %v207
    %336 = vmatpush.msra.mxu0 %v205
    %337 = vmatpush.msra.mxu0 %v203
    %338 = vmatpush.msra.mxu0 %v201
    %339 = vmatmul.f32.gmra.mxu0 %v321
    %v340 = vpop.f32.mrf.mxu0
    %v341 = vadd.f32 0.0, %v340
    %342 = vdwg.mxu0
    %343 = vmatpush.msra.mxu0 0.0
    %344 = vmatpush.msra.mxu0 0.0
    %345 = vmatpush.msra.mxu0 0.0
    %346 = vmatpush.msra.mxu0 0.0
    %347 = vmatpush.msra.mxu0 0.0
    %348 = vmatpush.msra.mxu0 0.0
    %349 = vmatpush.msra.mxu0 0.0
    %350 = vmatpush.msra.mxu0 0.0
    %351 = vmatpush.msra.mxu0 0.0
    %352 = vmatpush.msra.mxu0 0.0
    %353 = vmatpush.msra.mxu0 0.0
    %354 = vmatpush.msra.mxu0 0.0
    %355 = vmatpush.msra.mxu0 %v208
    %356 = vmatpush.msra.mxu0 %v206
    %357 = vmatpush.msra.mxu0 %v204
    %358 = vmatpush.msra.mxu0 %v202
    %359 = vmatmul.f32.gmra.mxu0 %v321
    %v360 = vpop.f32.mrf.mxu0
    %v361 = vadd.f32 0.0, %v360
    %362 = vdwg.mxu0
    %v363 = vsel %vm258, %v341, %v361
    %v364 = vadd.f32 %v320, %v363
    %v365 = vxor.u32 %v364, 2147483648
    %v366 = vmul.f32 %v365, 1.442695
    %v367 = vpow.pop %v366
    %v368 = vadd.f32 %v367, 1.0
    %v369 = vrcp.pop %v368
    %v370 = vmul.f32 %v368, %v369
    %v371 = vsub.f32 1.0, %v370
    %v372 = vmul.f32 %v369, %v371
    %v373 = vadd.f32 %v369, %v372
    %vm374 = vweird.f32 %v368
    %vm375 = vweird.f32 %v369
    %vm376 = vmor %vm374, %vm375
    %v377 = vsel %vm376, %v369, %v373
    %v378 = vand.u32 2147483647, %v368
    %vm379 = vcmp.eq.f32.partialorder %v378, 8.507059e+37
    %v380 = vand.u32 %v368, 2147483648
    %v381 = vor.u32 1.1754944e-38, %v380
    %v382 = vsel %vm379, %v381, %v377
    %v383 = vmul.f32 1.0, %v382
    %v384 = vtanh.pop %v364
    %v385 = vmul.f32 %v383, %v306
    %387 = vrot.lane.b32.xlu0 %v384, 64
    %v388 = vpop.permute.xlu0 %387
    %v390 = vmul.f32 %v383, %v388
    %392 = vrot.lane.b32.xlu0 %v390, 32
    %v393 = vpop.permute.xlu0 %392
    %v395 = vadd.f32 %v385, %v393
    %v396 = vtanh.pop %v395
    %398 = vrot.lane.b32.xlu0 %v396, 64
    %v399 = vpop.permute.xlu0 %398
    %v401 = vmul.f32 %v383, %v399
    %v402 = vsel %vm212, 1, 6
    %vm403 = vcmp.lt.s32.totalorder %v402, %v209
    %v404 = vsel %vm403, 1, 0
    %405 = vset.pattern.permute.xlu0 0
    %406 = vperm.xlu0 %405, %v404
    %v407 = vpop.permute.xlu0 %406
    %vm408 = vcmp.eq.s32.totalorder %v407, 1
    %v409 = vsel %vm408, %v401, %v305
    %v410 = vsel %vm408, %v395, %v306
    %v411 = vsel %vm408, %v401, 0.0
    %413 = vrot.lane.b32.xlu0 %v411, 32
    %v414 = vpop.permute.xlu0 %413
    %s416 = scalar_lea.vmem [#allocation10], 4
    %417 = vst.msk [vmem:[%s416] sm:$0xf] %vm311, %v414
    %418 = vrot.lane.b32.xlu0 %v411, 64
    %v419 = vpop.permute.xlu0 %418
    %s421 = scalar_lea.vmem [#allocation10], 24
    %422 = vst.msk [vmem:[%s421 - $0x4] sm:$0xf0] %vm317, %v419
    %s423 = scalar_lea.vmem [#allocation3], 16
    %v424 = vld [vmem:[%s423] sm:$0xff]
    %426 = vrot.lane.b32.xlu0 %v409, 32
    %v427 = vpop.permute.xlu0 %426
    %v428 = vsel %vm90, %v427, 0
    %430 = vmatpush.msra.mxu0 0.0
    %431 = vmatpush.msra.mxu0 0.0
    %432 = vmatpush.msra.mxu0 0.0
    %433 = vmatpush.msra.mxu0 0.0
    %434 = vmatpush.msra.mxu0 0.0
    %435 = vmatpush.msra.mxu0 0.0
    %436 = vmatpush.msra.mxu0 0.0
    %437 = vmatpush.msra.mxu0 0.0
    %438 = vmatpush.msra.mxu0 0.0
    %439 = vmatpush.msra.mxu0 0.0
    %440 = vmatpush.msra.mxu0 0.0
    %441 = vmatpush.msra.mxu0 0.0
    %442 = vmatpush.msra.mxu0 %v207
    %443 = vmatpush.msra.mxu0 %v205
    %444 = vmatpush.msra.mxu0 %v203
    %445 = vmatpush.msra.mxu0 %v201
    %446 = vmatmul.f32.gmra.mxu0 %v428
    %v447 = vpop.f32.mrf.mxu0
    %v448 = vadd.f32 0.0, %v447
    %449 = vdwg.mxu0
    %450 = vmatpush.msra.mxu0 0.0
    %451 = vmatpush.msra.mxu0 0.0
    %452 = vmatpush.msra.mxu0 0.0
    %453 = vmatpush.msra.mxu0 0.0
    %454 = vmatpush.msra.mxu0 0.0
    %455 = vmatpush.msra.mxu0 0.0
    %456 = vmatpush.msra.mxu0 0.0
    %457 = vmatpush.msra.mxu0 0.0
    %458 = vmatpush.msra.mxu0 0.0
    %459 = vmatpush.msra.mxu0 0.0
    %460 = vmatpush.msra.mxu0 0.0
    %461 = vmatpush.msra.mxu0 0.0
    %462 = vmatpush.msra.mxu0 %v208
    %463 = vmatpush.msra.mxu0 %v206
    %464 = vmatpush.msra.mxu0 %v204
    %465 = vmatpush.msra.mxu0 %v202
    %466 = vmatmul.f32.gmra.mxu0 %v428
    %v467 = vpop.f32.mrf.mxu0
    %v468 = vadd.f32 0.0, %v467
    %469 = vdwg.mxu0
    %v470 = vsel %vm258, %v448, %v468
    %v471 = vadd.f32 %v424, %v470
    %v472 = vxor.u32 %v471, 2147483648
    %v473 = vmul.f32 %v472, 1.442695
    %v474 = vpow.pop %v473
    %v475 = vadd.f32 %v474, 1.0
    %v476 = vrcp.pop %v475
    %v477 = vmul.f32 %v475, %v476
    %v478 = vsub.f32 1.0, %v477
    %v479 = vmul.f32 %v476, %v478
    %v480 = vadd.f32 %v476, %v479
    %vm481 = vweird.f32 %v475
    %vm482 = vweird.f32 %v476
    %vm483 = vmor %vm481, %vm482
    %v484 = vsel %vm483, %v476, %v480
    %v485 = vand.u32 2147483647, %v475
    %vm486 = vcmp.eq.f32.partialorder %v485, 8.507059e+37
    %v487 = vand.u32 %v475, 2147483648
    %v488 = vor.u32 1.1754944e-38, %v487
    %v489 = vsel %vm486, %v488, %v484
    %v490 = vmul.f32 1.0, %v489
    %v491 = vtanh.pop %v471
    %v492 = vmul.f32 %v490, %v410
    %494 = vrot.lane.b32.xlu0 %v491, 64
    %v495 = vpop.permute.xlu0 %494
    %v497 = vmul.f32 %v490, %v495
    %499 = vrot.lane.b32.xlu0 %v497, 32
    %v500 = vpop.permute.xlu0 %499
    %v502 = vadd.f32 %v492, %v500
    %v503 = vtanh.pop %v502
    %505 = vrot.lane.b32.xlu0 %v503, 64
    %v506 = vpop.permute.xlu0 %505
    %v508 = vmul.f32 %v490, %v506
    %v509 = vsel %vm212, 2, 5
    %vm510 = vcmp.lt.s32.totalorder %v509, %v209
    %v511 = vsel %vm510, 1, 0
    %512 = vset.pattern.permute.xlu0 0
    %513 = vperm.xlu0 %512, %v511
    %v514 = vpop.permute.xlu0 %513
    %vm515 = vcmp.eq.s32.totalorder %v514, 1
    %v516 = vsel %vm515, %v508, %v409
    %v517 = vsel %vm515, %v502, %v410
    %v518 = vsel %vm515, %v508, 0.0
    %520 = vrot.lane.b32.xlu0 %v518, 32
    %v521 = vpop.permute.xlu0 %520
    %s523 = scalar_lea.vmem [#allocation10], 8
    %524 = vst.msk [vmem:[%s523] sm:$0xf] %vm311, %v521
    %525 = vrot.lane.b32.xlu0 %v518, 64
    %v526 = vpop.permute.xlu0 %525
    %s528 = scalar_lea.vmem [#allocation10], 20
    %529 = vst.msk [vmem:[%s528 - $0x4] sm:$0xf0] %vm317, %v526
    %s530 = scalar_lea.vmem [#allocation3], 24
    %v531 = vld [vmem:[%s530] sm:$0xff]
    %533 = vrot.lane.b32.xlu0 %v516, 32
    %v534 = vpop.permute.xlu0 %533
    %v535 = vsel %vm90, %v534, 0
    %537 = vmatpush.msra.mxu0 0.0
    %538 = vmatpush.msra.mxu0 0.0
    %539 = vmatpush.msra.mxu0 0.0
    %540 = vmatpush.msra.mxu0 0.0
    %541 = vmatpush.msra.mxu0 0.0
    %542 = vmatpush.msra.mxu0 0.0
    %543 = vmatpush.msra.mxu0 0.0
    %544 = vmatpush.msra.mxu0 0.0
    %545 = vmatpush.msra.mxu0 0.0
    %546 = vmatpush.msra.mxu0 0.0
    %547 = vmatpush.msra.mxu0 0.0
    %548 = vmatpush.msra.mxu0 0.0
    %549 = vmatpush.msra.mxu0 %v207
    %550 = vmatpush.msra.mxu0 %v205
    %551 = vmatpush.msra.mxu0 %v203
    %552 = vmatpush.msra.mxu0 %v201
    %553 = vmatmul.f32.gmra.mxu0 %v535
    %v554 = vpop.f32.mrf.mxu0
    %v555 = vadd.f32 0.0, %v554
    %556 = vdwg.mxu0
    %557 = vmatpush.msra.mxu0 0.0
    %558 = vmatpush.msra.mxu0 0.0
    %559 = vmatpush.msra.mxu0 0.0
    %560 = vmatpush.msra.mxu0 0.0
    %561 = vmatpush.msra.mxu0 0.0
    %562 = vmatpush.msra.mxu0 0.0
    %563 = vmatpush.msra.mxu0 0.0
    %564 = vmatpush.msra.mxu0 0.0
    %565 = vmatpush.msra.mxu0 0.0
    %566 = vmatpush.msra.mxu0 0.0
    %567 = vmatpush.msra.mxu0 0.0
    %568 = vmatpush.msra.mxu0 0.0
    %569 = vmatpush.msra.mxu0 %v208
    %570 = vmatpush.msra.mxu0 %v206
    %571 = vmatpush.msra.mxu0 %v204
    %572 = vmatpush.msra.mxu0 %v202
    %573 = vmatmul.f32.gmra.mxu0 %v535
    %v574 = vpop.f32.mrf.mxu0
    %v575 = vadd.f32 0.0, %v574
    %576 = vdwg.mxu0
    %v577 = vsel %vm258, %v555, %v575
    %v578 = vadd.f32 %v531, %v577
    %v579 = vxor.u32 %v578, 2147483648
    %v580 = vmul.f32 %v579, 1.442695
    %v581 = vpow.pop %v580
    %v582 = vadd.f32 %v581, 1.0
    %v583 = vrcp.pop %v582
    %v584 = vmul.f32 %v582, %v583
    %v585 = vsub.f32 1.0, %v584
    %v586 = vmul.f32 %v583, %v585
    %v587 = vadd.f32 %v583, %v586
    %vm588 = vweird.f32 %v582
    %vm589 = vweird.f32 %v583
    %vm590 = vmor %vm588, %vm589
    %v591 = vsel %vm590, %v583, %v587
    %v592 = vand.u32 2147483647, %v582
    %vm593 = vcmp.eq.f32.partialorder %v592, 8.507059e+37
    %v594 = vand.u32 %v582, 2147483648
    %v595 = vor.u32 1.1754944e-38, %v594
    %v596 = vsel %vm593, %v595, %v591
    %v597 = vmul.f32 1.0, %v596
    %v598 = vtanh.pop %v578
    %v599 = vmul.f32 %v597, %v517
    %601 = vrot.lane.b32.xlu0 %v598, 64
    %v602 = vpop.permute.xlu0 %601
    %v604 = vmul.f32 %v597, %v602
    %606 = vrot.lane.b32.xlu0 %v604, 32
    %v607 = vpop.permute.xlu0 %606
    %v609 = vadd.f32 %v599, %v607
    %v610 = vtanh.pop %v609
    %612 = vrot.lane.b32.xlu0 %v610, 64
    %v613 = vpop.permute.xlu0 %612
    %v615 = vmul.f32 %v597, %v613
    %v616 = vsel %vm212, 3, 4
    %vm617 = vcmp.lt.s32.totalorder %v616, %v209
    %v618 = vsel %vm617, 1, 0
    %619 = vset.pattern.permute.xlu0 0
    %620 = vperm.xlu0 %619, %v618
    %v621 = vpop.permute.xlu0 %620
    %vm622 = vcmp.eq.s32.totalorder %v621, 1
    %v623 = vsel %vm622, %v615, %v516
    %v624 = vsel %vm622, %v609, %v517
    %v625 = vsel %vm622, %v615, 0.0
    %627 = vrot.lane.b32.xlu0 %v625, 32
    %v628 = vpop.permute.xlu0 %627
    %s630 = scalar_lea.vmem [#allocation10], 12
    %631 = vst.msk [vmem:[%s630] sm:$0xf] %vm311, %v628
    %632 = vrot.lane.b32.xlu0 %v625, 64
    %v633 = vpop.permute.xlu0 %632
    %s635 = scalar_lea.vmem [#allocation10], 16
    %636 = vst.msk [vmem:[%s635 - $0x4] sm:$0xf0] %vm317, %v633
    %s637 = scalar_lea.vmem [#allocation3], 32
    %v638 = vld [vmem:[%s637] sm:$0xff]
    %640 = vrot.lane.b32.xlu0 %v623, 32
    %v641 = vpop.permute.xlu0 %640
    %v642 = vsel %vm90, %v641, 0
    %644 = vmatpush.msra.mxu0 0.0
    %645 = vmatpush.msra.mxu0 0.0
    %646 = vmatpush.msra.mxu0 0.0
    %647 = vmatpush.msra.mxu0 0.0
    %648 = vmatpush.msra.mxu0 0.0
    %649 = vmatpush.msra.mxu0 0.0
    %650 = vmatpush.msra.mxu0 0.0
    %651 = vmatpush.msra.mxu0 0.0
    %652 = vmatpush.msra.mxu0 0.0
    %653 = vmatpush.msra.mxu0 0.0
    %654 = vmatpush.msra.mxu0 0.0
    %655 = vmatpush.msra.mxu0 0.0
    %656 = vmatpush.msra.mxu0 %v207
    %657 = vmatpush.msra.mxu0 %v205
    %658 = vmatpush.msra.mxu0 %v203
    %659 = vmatpush.msra.mxu0 %v201
    %660 = vmatmul.f32.gmra.mxu0 %v642
    %v661 = vpop.f32.mrf.mxu0
    %v662 = vadd.f32 0.0, %v661
    %663 = vdwg.mxu0
    %664 = vmatpush.msra.mxu0 0.0
    %665 = vmatpush.msra.mxu0 0.0
    %666 = vmatpush.msra.mxu0 0.0
    %667 = vmatpush.msra.mxu0 0.0
    %668 = vmatpush.msra.mxu0 0.0
    %669 = vmatpush.msra.mxu0 0.0
    %670 = vmatpush.msra.mxu0 0.0
    %671 = vmatpush.msra.mxu0 0.0
    %672 = vmatpush.msra.mxu0 0.0
    %673 = vmatpush.msra.mxu0 0.0
    %674 = vmatpush.msra.mxu0 0.0
    %675 = vmatpush.msra.mxu0 0.0
    %676 = vmatpush.msra.mxu0 %v208
    %677 = vmatpush.msra.mxu0 %v206
    %678 = vmatpush.msra.mxu0 %v204
    %679 = vmatpush.msra.mxu0 %v202
    %680 = vmatmul.f32.gmra.mxu0 %v642
    %v681 = vpop.f32.mrf.mxu0
    %v682 = vadd.f32 0.0, %v681
    %683 = vdwg.mxu0
    %v684 = vsel %vm258, %v662, %v682
    %v685 = vadd.f32 %v638, %v684
    %v686 = vxor.u32 %v685, 2147483648
    %v687 = vmul.f32 %v686, 1.442695
    %v688 = vpow.pop %v687
    %v689 = vadd.f32 %v688, 1.0
    %v690 = vrcp.pop %v689
    %v691 = vmul.f32 %v689, %v690
    %v692 = vsub.f32 1.0, %v691
    %v693 = vmul.f32 %v690, %v692
    %v694 = vadd.f32 %v690, %v693
    %vm695 = vweird.f32 %v689
    %vm696 = vweird.f32 %v690
    %vm697 = vmor %vm695, %vm696
    %v698 = vsel %vm697, %v690, %v694
    %v699 = vand.u32 2147483647, %v689
    %vm700 = vcmp.eq.f32.partialorder %v699, 8.507059e+37
    %v701 = vand.u32 %v689, 2147483648
    %v702 = vor.u32 1.1754944e-38, %v701
    %v703 = vsel %vm700, %v702, %v698
    %v704 = vmul.f32 1.0, %v703
    %v705 = vtanh.pop %v685
    %v706 = vmul.f32 %v704, %v624
    %708 = vrot.lane.b32.xlu0 %v705, 64
    %v709 = vpop.permute.xlu0 %708
    %v711 = vmul.f32 %v704, %v709
    %713 = vrot.lane.b32.xlu0 %v711, 32
    %v714 = vpop.permute.xlu0 %713
    %v716 = vadd.f32 %v706, %v714
    %v717 = vtanh.pop %v716
    %719 = vrot.lane.b32.xlu0 %v717, 64
    %v720 = vpop.permute.xlu0 %719
    %v722 = vmul.f32 %v704, %v720
    %v723 = vsel %vm212, 4, 3
    %vm724 = vcmp.lt.s32.totalorder %v723, %v209
    %v725 = vsel %vm724, 1, 0
    %726 = vset.pattern.permute.xlu0 0
    %727 = vperm.xlu0 %726, %v725
    %v728 = vpop.permute.xlu0 %727
    %vm729 = vcmp.eq.s32.totalorder %v728, 1
    %v730 = vsel %vm729, %v722, %v623
    %v731 = vsel %vm729, %v716, %v624
    %v732 = vsel %vm729, %v722, 0.0
    %734 = vrot.lane.b32.xlu0 %v732, 32
    %v735 = vpop.permute.xlu0 %734
    %737 = vst.msk [vmem:[%s635] sm:$0xf] %vm311, %v735
    %738 = vrot.lane.b32.xlu0 %v732, 64
    %v739 = vpop.permute.xlu0 %738
    %741 = vst.msk [vmem:[%s630 - $0x4] sm:$0xf0] %vm317, %v739
    %s742 = scalar_lea.vmem [#allocation3], 40
    %v743 = vld [vmem:[%s742] sm:$0xff]
    %745 = vrot.lane.b32.xlu0 %v730, 32
    %v746 = vpop.permute.xlu0 %745
    %v747 = vsel %vm90, %v746, 0
    %749 = vmatpush.msra.mxu0 0.0
    %750 = vmatpush.msra.mxu0 0.0
    %751 = vmatpush.msra.mxu0 0.0
    %752 = vmatpush.msra.mxu0 0.0
    %753 = vmatpush.msra.mxu0 0.0
    %754 = vmatpush.msra.mxu0 0.0
    %755 = vmatpush.msra.mxu0 0.0
    %756 = vmatpush.msra.mxu0 0.0
    %757 = vmatpush.msra.mxu0 0.0
    %758 = vmatpush.msra.mxu0 0.0
    %759 = vmatpush.msra.mxu0 0.0
    %760 = vmatpush.msra.mxu0 0.0
    %761 = vmatpush.msra.mxu0 %v207
    %762 = vmatpush.msra.mxu0 %v205
    %763 = vmatpush.msra.mxu0 %v203
    %764 = vmatpush.msra.mxu0 %v201
    %765 = vmatmul.f32.gmra.mxu0 %v747
    %v766 = vpop.f32.mrf.mxu0
    %v767 = vadd.f32 0.0, %v766
    %768 = vdwg.mxu0
    %769 = vmatpush.msra.mxu0 0.0
    %770 = vmatpush.msra.mxu0 0.0
    %771 = vmatpush.msra.mxu0 0.0
    %772 = vmatpush.msra.mxu0 0.0
    %773 = vmatpush.msra.mxu0 0.0
    %774 = vmatpush.msra.mxu0 0.0
    %775 = vmatpush.msra.mxu0 0.0
    %776 = vmatpush.msra.mxu0 0.0
    %777 = vmatpush.msra.mxu0 0.0
    %778 = vmatpush.msra.mxu0 0.0
    %779 = vmatpush.msra.mxu0 0.0
    %780 = vmatpush.msra.mxu0 0.0
    %781 = vmatpush.msra.mxu0 %v208
    %782 = vmatpush.msra.mxu0 %v206
    %783 = vmatpush.msra.mxu0 %v204
    %784 = vmatpush.msra.mxu0 %v202
    %785 = vmatmul.f32.gmra.mxu0 %v747
    %v786 = vpop.f32.mrf.mxu0
    %v787 = vadd.f32 0.0, %v786
    %788 = vdwg.mxu0
    %v789 = vsel %vm258, %v767, %v787
    %v790 = vadd.f32 %v743, %v789
    %v791 = vxor.u32 %v790, 2147483648
    %v792 = vmul.f32 %v791, 1.442695
    %v793 = vpow.pop %v792
    %v794 = vadd.f32 %v793, 1.0
    %v795 = vrcp.pop %v794
    %v796 = vmul.f32 %v794, %v795
    %v797 = vsub.f32 1.0, %v796
    %v798 = vmul.f32 %v795, %v797
    %v799 = vadd.f32 %v795, %v798
    %vm800 = vweird.f32 %v794
    %vm801 = vweird.f32 %v795
    %vm802 = vmor %vm800, %vm801
    %v803 = vsel %vm802, %v795, %v799
    %v804 = vand.u32 2147483647, %v794
    %vm805 = vcmp.eq.f32.partialorder %v804, 8.507059e+37
    %v806 = vand.u32 %v794, 2147483648
    %v807 = vor.u32 1.1754944e-38, %v806
    %v808 = vsel %vm805, %v807, %v803
    %v809 = vmul.f32 1.0, %v808
    %v810 = vtanh.pop %v790
    %v811 = vmul.f32 %v809, %v731
    %813 = vrot.lane.b32.xlu0 %v810, 64
    %v814 = vpop.permute.xlu0 %813
    %v816 = vmul.f32 %v809, %v814
    %818 = vrot.lane.b32.xlu0 %v816, 32
    %v819 = vpop.permute.xlu0 %818
    %v821 = vadd.f32 %v811, %v819
    %v822 = vtanh.pop %v821
    %824 = vrot.lane.b32.xlu0 %v822, 64
    %v825 = vpop.permute.xlu0 %824
    %v827 = vmul.f32 %v809, %v825
    %v828 = vsel %vm212, 5, 2
    %vm829 = vcmp.lt.s32.totalorder %v828, %v209
    %v830 = vsel %vm829, 1, 0
    %831 = vset.pattern.permute.xlu0 0
    %832 = vperm.xlu0 %831, %v830
    %v833 = vpop.permute.xlu0 %832
    %vm834 = vcmp.eq.s32.totalorder %v833, 1
    %v835 = vsel %vm834, %v827, %v730
    %v836 = vsel %vm834, %v821, %v731
    %v837 = vsel %vm834, %v827, 0.0
    %839 = vrot.lane.b32.xlu0 %v837, 32
    %v840 = vpop.permute.xlu0 %839
    %842 = vst.msk [vmem:[%s528] sm:$0xf] %vm311, %v840
    %843 = vrot.lane.b32.xlu0 %v837, 64
    %v844 = vpop.permute.xlu0 %843
    %846 = vst.msk [vmem:[%s523 - $0x4] sm:$0xf0] %vm317, %v844
    %s847 = scalar_lea.vmem [#allocation3], 48
    %v848 = vld [vmem:[%s847] sm:$0xff]
    %850 = vrot.lane.b32.xlu0 %v835, 32
    %v851 = vpop.permute.xlu0 %850
    %v852 = vsel %vm90, %v851, 0
    %854 = vmatpush.msra.mxu0 0.0
    %855 = vmatpush.msra.mxu0 0.0
    %856 = vmatpush.msra.mxu0 0.0
    %857 = vmatpush.msra.mxu0 0.0
    %858 = vmatpush.msra.mxu0 0.0
    %859 = vmatpush.msra.mxu0 0.0
    %860 = vmatpush.msra.mxu0 0.0
    %861 = vmatpush.msra.mxu0 0.0
    %862 = vmatpush.msra.mxu0 0.0
    %863 = vmatpush.msra.mxu0 0.0
    %864 = vmatpush.msra.mxu0 0.0
    %865 = vmatpush.msra.mxu0 0.0
    %866 = vmatpush.msra.mxu0 %v207
    %867 = vmatpush.msra.mxu0 %v205
    %868 = vmatpush.msra.mxu0 %v203
    %869 = vmatpush.msra.mxu0 %v201
    %870 = vmatmul.f32.gmra.mxu0 %v852
    %v871 = vpop.f32.mrf.mxu0
    %v872 = vadd.f32 0.0, %v871
    %873 = vdwg.mxu0
    %874 = vmatpush.msra.mxu0 0.0
    %875 = vmatpush.msra.mxu0 0.0
    %876 = vmatpush.msra.mxu0 0.0
    %877 = vmatpush.msra.mxu0 0.0
    %878 = vmatpush.msra.mxu0 0.0
    %879 = vmatpush.msra.mxu0 0.0
    %880 = vmatpush.msra.mxu0 0.0
    %881 = vmatpush.msra.mxu0 0.0
    %882 = vmatpush.msra.mxu0 0.0
    %883 = vmatpush.msra.mxu0 0.0
    %884 = vmatpush.msra.mxu0 0.0
    %885 = vmatpush.msra.mxu0 0.0
    %886 = vmatpush.msra.mxu0 %v208
    %887 = vmatpush.msra.mxu0 %v206
    %888 = vmatpush.msra.mxu0 %v204
    %889 = vmatpush.msra.mxu0 %v202
    %890 = vmatmul.f32.gmra.mxu0 %v852
    %v891 = vpop.f32.mrf.mxu0
    %v892 = vadd.f32 0.0, %v891
    %893 = vdwg.mxu0
    %v894 = vsel %vm258, %v872, %v892
    %v895 = vadd.f32 %v848, %v894
    %v896 = vxor.u32 %v895, 2147483648
    %v897 = vmul.f32 %v896, 1.442695
    %v898 = vpow.pop %v897
    %v899 = vadd.f32 %v898, 1.0
    %v900 = vrcp.pop %v899
    %v901 = vmul.f32 %v899, %v900
    %v902 = vsub.f32 1.0, %v901
    %v903 = vmul.f32 %v900, %v902
    %v904 = vadd.f32 %v900, %v903
    %vm905 = vweird.f32 %v899
    %vm906 = vweird.f32 %v900
    %vm907 = vmor %vm905, %vm906
    %v908 = vsel %vm907, %v900, %v904
    %v909 = vand.u32 2147483647, %v899
    %vm910 = vcmp.eq.f32.partialorder %v909, 8.507059e+37
    %v911 = vand.u32 %v899, 2147483648
    %v912 = vor.u32 1.1754944e-38, %v911
    %v913 = vsel %vm910, %v912, %v908
    %v914 = vmul.f32 1.0, %v913
    %v915 = vtanh.pop %v895
    %v916 = vmul.f32 %v914, %v836
    %918 = vrot.lane.b32.xlu0 %v915, 64
    %v919 = vpop.permute.xlu0 %918
    %v921 = vmul.f32 %v914, %v919
    %923 = vrot.lane.b32.xlu0 %v921, 32
    %v924 = vpop.permute.xlu0 %923
    %v926 = vadd.f32 %v916, %v924
    %v927 = vtanh.pop %v926
    %929 = vrot.lane.b32.xlu0 %v927, 64
    %v930 = vpop.permute.xlu0 %929
    %v932 = vmul.f32 %v914, %v930
    %v933 = vsel %vm212, 6, 1
    %vm934 = vcmp.lt.s32.totalorder %v933, %v209
    %v935 = vsel %vm934, 1, 0
    %936 = vset.pattern.permute.xlu0 0
    %937 = vperm.xlu0 %936, %v935
    %v938 = vpop.permute.xlu0 %937
    %vm939 = vcmp.eq.s32.totalorder %v938, 1
    %v940 = vsel %vm939, %v932, %v835
    %v941 = vsel %vm939, %v926, %v836
    %v942 = vsel %vm939, %v932, 0.0
    %944 = vrot.lane.b32.xlu0 %v942, 32
    %v945 = vpop.permute.xlu0 %944
    %947 = vst.msk [vmem:[%s421] sm:$0xf] %vm311, %v945
    %948 = vrot.lane.b32.xlu0 %v942, 64
    %v949 = vpop.permute.xlu0 %948
    %951 = vst.msk [vmem:[%s416 - $0x4] sm:$0xf0] %vm317, %v949
    %s952 = scalar_lea.vmem [#allocation3], 56
    %v953 = vld [vmem:[%s952] sm:$0xff]
    %955 = vrot.lane.b32.xlu0 %v940, 32
    %v956 = vpop.permute.xlu0 %955
    %v957 = vsel %vm90, %v956, 0
    %959 = vmatpush.msra.mxu0 0.0
    %960 = vmatpush.msra.mxu0 0.0
    %961 = vmatpush.msra.mxu0 0.0
    %962 = vmatpush.msra.mxu0 0.0
    %963 = vmatpush.msra.mxu0 0.0
    %964 = vmatpush.msra.mxu0 0.0
    %965 = vmatpush.msra.mxu0 0.0
    %966 = vmatpush.msra.mxu0 0.0
    %967 = vmatpush.msra.mxu0 0.0
    %968 = vmatpush.msra.mxu0 0.0
    %969 = vmatpush.msra.mxu0 0.0
    %970 = vmatpush.msra.mxu0 0.0
    %971 = vmatpush.msra.mxu0 %v207
    %972 = vmatpush.msra.mxu0 %v205
    %973 = vmatpush.msra.mxu0 %v203
    %974 = vmatpush.msra.mxu0 %v201
    %975 = vmatmul.f32.gmra.mxu0 %v957
    %v976 = vpop.f32.mrf.mxu0
    %v977 = vadd.f32 0.0, %v976
    %978 = vdwg.mxu0
    %979 = vmatpush.msra.mxu0 0.0
    %980 = vmatpush.msra.mxu0 0.0
    %981 = vmatpush.msra.mxu0 0.0
    %982 = vmatpush.msra.mxu0 0.0
    %983 = vmatpush.msra.mxu0 0.0
    %984 = vmatpush.msra.mxu0 0.0
    %985 = vmatpush.msra.mxu0 0.0
    %986 = vmatpush.msra.mxu0 0.0
    %987 = vmatpush.msra.mxu0 0.0
    %988 = vmatpush.msra.mxu0 0.0
    %989 = vmatpush.msra.mxu0 0.0
    %990 = vmatpush.msra.mxu0 0.0
    %991 = vmatpush.msra.mxu0 %v208
    %992 = vmatpush.msra.mxu0 %v206
    %993 = vmatpush.msra.mxu0 %v204
    %994 = vmatpush.msra.mxu0 %v202
    %995 = vmatmul.f32.gmra.mxu0 %v957
    %v996 = vpop.f32.mrf.mxu0
    %v997 = vadd.f32 0.0, %v996
    %998 = vdwg.mxu0
    %v999 = vsel %vm258, %v977, %v997
    %v1000 = vadd.f32 %v953, %v999
    %v1001 = vxor.u32 %v1000, 2147483648
    %v1002 = vmul.f32 %v1001, 1.442695
    %v1003 = vpow.pop %v1002
    %v1004 = vadd.f32 %v1003, 1.0
    %v1005 = vrcp.pop %v1004
    %v1006 = vmul.f32 %v1004, %v1005
    %v1007 = vsub.f32 1.0, %v1006
    %v1008 = vmul.f32 %v1005, %v1007
    %v1009 = vadd.f32 %v1005, %v1008
    %vm1010 = vweird.f32 %v1004
    %vm1011 = vweird.f32 %v1005
    %vm1012 = vmor %vm1010, %vm1011
    %v1013 = vsel %vm1012, %v1005, %v1009
    %v1014 = vand.u32 2147483647, %v1004
    %vm1015 = vcmp.eq.f32.partialorder %v1014, 8.507059e+37
    %v1016 = vand.u32 %v1004, 2147483648
    %v1017 = vor.u32 1.1754944e-38, %v1016
    %v1018 = vsel %vm1015, %v1017, %v1013
    %v1019 = vmul.f32 1.0, %v1018
    %v1020 = vtanh.pop %v1000
    %v1021 = vmul.f32 %v1019, %v941
    %1023 = vrot.lane.b32.xlu0 %v1020, 64
    %v1024 = vpop.permute.xlu0 %1023
    %v1026 = vmul.f32 %v1019, %v1024
    %1028 = vrot.lane.b32.xlu0 %v1026, 32
    %v1029 = vpop.permute.xlu0 %1028
    %v1031 = vadd.f32 %v1021, %v1029
    %v1032 = vtanh.pop %v1031
    %1034 = vrot.lane.b32.xlu0 %v1032, 64
    %v1035 = vpop.permute.xlu0 %1034
    %v1037 = vmul.f32 %v1019, %v1035
    %v1038 = vsel %vm212, 7, 0
    %vm1039 = vcmp.lt.s32.totalorder %v1038, %v209
    %v1040 = vsel %vm1039, 1, 0
    %1041 = vset.pattern.permute.xlu0 0
    %1042 = vperm.xlu0 %1041, %v1040
    %v1043 = vpop.permute.xlu0 %1042
    %vm1044 = vcmp.eq.s32.totalorder %v1043, 1
    %v1045 = vsel %vm1044, %v1037, %v940
    %v1046 = vsel %vm1044, %v1031, %v941
    %v1047 = vsel %vm1044, %v1037, 0.0
    %1049 = vrot.lane.b32.xlu0 %v1047, 32
    %v1050 = vpop.permute.xlu0 %1049
    %1052 = vst.msk [vmem:[%s316] sm:$0xf] %vm311, %v1050
    %1053 = vrot.lane.b32.xlu0 %v1047, 64
    %v1054 = vpop.permute.xlu0 %1053
    %1056 = vst.msk [vmem:[#allocation10 - $0x4] sm:$0xf0] %vm317, %v1054
    %1058 = vrot.lane.b32.xlu0 %v1045, 32
    %v1059 = vpop.permute.xlu0 %1058
    %1061 = vst.msk [vmem:[#allocation11] sm:$0xff] %vm90, %v1059
    %1063 = vrot.lane.b32.xlu0 %v1046, 96
    %v1064 = vpop.permute.xlu0 %1063
    %1066 = vst.msk [vmem:[#allocation13] sm:$0xff] %vm90, %v1064
    // Predicated region
    $region34: #{tpu_custom_call.1} parent=1 // pred_check
      _
    $region35: #{tpu_custom_call.1} parent=1 // pred_check_branch
      %1068 = sbr.rel (0) target = $region37
    $region36: #{tpu_custom_call.1} parent=1 // pred_region
      %1070 = vsyncadd [#allocation6], 0
      %s1071 = sshll.u32 [#allocation10], 4
      %s1072 = int_to_ptr.vmem [resolvable:$true] %s1071
      %s1073 = sshll.u32 %s5, 4
      %s1074 = int_to_ptr.hbm [resolvable:$true] %s1073
      %1079 = dma.vmem_to_hbm [thread:$0]  %s1072, 512, %s1074, [#allocation6], 64, 64, 4
    $region37: #{tpu_custom_call.1} parent=1 // pred_fallthru
      _
    // Predicated region
    $region38: #{tpu_custom_call.1} parent=1 // pred_check
      _
    $region39: #{tpu_custom_call.1} parent=1 // pred_check_branch
      %1081 = sbr.rel (0) target = $region41
    $region40: #{tpu_custom_call.1} parent=1 // pred_region
      %1083 = vsyncadd [#allocation12], 0
      %s1085 = sshll.u32 [#allocation11], 4
      %s1086 = int_to_ptr.vmem [resolvable:$true] %s1085
      %s1087 = sshll.u32 %s6, 4
      %s1088 = int_to_ptr.hbm [resolvable:$true] %s1087
      %1090 = dma.vmem_to_hbm [thread:$0]  %s1086, 128, %s1088, [#allocation12]
    $region41: #{tpu_custom_call.1} parent=1 // pred_fallthru
      _
    // Predicated region
    $region42: #{tpu_custom_call.1} parent=1 // pred_check
      _
    $region43: #{tpu_custom_call.1} parent=1 // pred_check_branch
      %1092 = sbr.rel (0) target = $region45
    $region44: #{tpu_custom_call.1} parent=1 // pred_region
      %1094 = vsyncadd [#allocation12], 0
      %s1096 = sshll.u32 [#allocation13], 4
      %s1097 = int_to_ptr.vmem [resolvable:$true] %s1096
      %s1098 = sshll.u32 %s7, 4
      %s1099 = int_to_ptr.hbm [resolvable:$true] %s1098
      %1101 = dma.vmem_to_hbm [thread:$0]  %s1097, 128, %s1099, [#allocation12]
    $region45: #{tpu_custom_call.1} parent=1 // pred_fallthru
      _
    // Predicated region
    $region46: #{tpu_custom_call.1} parent=1 // pred_check
      _
    $region47: #{tpu_custom_call.1} parent=1 // pred_check_branch
      %1103 = sbr.rel (0) target = $region49
    $region48: #{tpu_custom_call.1} parent=1 // pred_region
      %1105 = dma.done [#allocation6], 512
    $region49: #{tpu_custom_call.1} parent=1 // pred_fallthru
      _
    // Predicated region
    $region50: #{tpu_custom_call.1} parent=1 // pred_check
      _
    $region51: #{tpu_custom_call.1} parent=1 // pred_check_branch
      %1107 = sbr.rel (0) target = $region53
    $region52: #{tpu_custom_call.1} parent=1 // pred_region
      %1109 = dma.done [#allocation12], 128
    $region53: #{tpu_custom_call.1} parent=1 // pred_fallthru
      _
    // Predicated region
    $region54: #{tpu_custom_call.1} parent=1 // pred_check
      _
    $region55: #{tpu_custom_call.1} parent=1 // pred_check_branch
      %1111 = sbr.rel (0) target = $region57
    $region56: #{tpu_custom_call.1} parent=1 // pred_region
      %1113 = dma.done [#allocation12], 128
    $region57: #{tpu_custom_call.1} parent=1 // pred_fallthru
      _
    %1114 = vsyncpa [#allocation5], 1
    %1115 = vsyncpa [#allocation8], 1
    %1116 = vsyncpa [#allocation6], 1
    %1117 = vsyncpa [#allocation12], 1

</llo_original>
